<compile_context>
chip_gen: v7x
topology: tpu7x:2x2x1
jax: 0.10.0
libtpu: 0.0.40
codegen_flags: <defaults>
</compile_context>

<pallas_src>
import functools

import jax
import jax.numpy as jnp
from jax import lax
from jax.experimental import pallas as pl
from jax.experimental.pallas import tpu as pltpu


def _liquid_recurrence_kernel(pre_ref, wh_ref, h_out_ref, h_scr, *,
                              tau, t_total, t_chunk, static_trip):
    """Serial liquid-neuron recurrence over one chunk of timesteps.

    pre_ref   : (t_chunk, B, H) precomputed x_t @ W_in^T + b   (VMEM)
    wh_ref    : (H, H)          W_hid^T                        (VMEM)
    h_out_ref : (t_chunk, B, H) hidden states h_t              (VMEM)
    h_scr     : (B, H)          carried hidden state; persists across grid steps.
    """
    c = pl.program_id(0)

    @pl.when(c == 0)
    def _():
        h_scr[...] = jnp.zeros_like(h_scr)  # h_{-1} = 0

    one_minus_tau = 1.0 - tau

    def step(i, h):
        pre = pre_ref[i] + jnp.dot(h, wh_ref[...],
                                   preferred_element_type=jnp.float32)
        h_new = one_minus_tau * h + tau * jnp.tanh(pre)
        h_out_ref[i] = h_new
        return h_new

    if static_trip:
        # Static trip count: full scheduler visibility; unroll short chunks.
        h_final = lax.fori_loop(0, t_chunk, step, h_scr[...],
                                unroll=bool(t_chunk <= 16))
    else:
        # Ragged last chunk: only run the valid timesteps.
        steps = jnp.minimum(t_chunk, t_total - c * t_chunk)
        h_final = lax.fori_loop(0, steps, step, h_scr[...])

    h_scr[...] = h_final


def _pick_chunk(T, t_chunk):
    """Pick a time-chunk size, preferring one that divides T (static trip count)."""
    t_chunk = max(1, min(int(t_chunk), T))
    for tc in range(t_chunk, 0, -1):
        if T % tc == 0:
            if tc >= max(1, t_chunk // 2):
                return tc, True
            break
    return t_chunk, False


def liquid_rnn_forward(x, w_in, w_hid, bias, w_out, b_out, *, tau=0.1,
                       t_chunk=128):
    """x: (B, T, I). Returns (B, T, O) — same convention as the PyTorch module."""
    B, T, I = x.shape
    H = w_hid.shape[0]
    O = w_out.shape[0]

    # --- pad batch to the f32 sublane count so the recurrence matmul has M >= 8.
    B_pad = -(-B // 8) * 8
    x32 = x.astype(jnp.float32)
    if B_pad != B:
        x32 = jnp.pad(x32, ((0, B_pad - B), (0, 0), (0, 0)))

    w_in32 = w_in.astype(jnp.float32)
    w_hid32 = w_hid.astype(jnp.float32)
    w_out32 = w_out.astype(jnp.float32)
    b32 = bias.astype(jnp.float32)
    bo32 = b_out.astype(jnp.float32)

    # --- hoisted input projection: one (B_pad*T, I) x (I, H) GEMM, with the
    #     (B,T,*) -> (T,B,*) transpose folded into the einsum output layout.
    pre_in = jnp.einsum('bti,hi->tbh', x32, w_in32) + b32        # (T, B_pad, H)

    tc, static_trip = _pick_chunk(T, t_chunk)
    grid = (pl.cdiv(T, tc),)

    kernel = functools.partial(_liquid_recurrence_kernel,
                               tau=float(tau), t_total=T, t_chunk=tc,
                               static_trip=static_trip)

    cost = pl.CostEstimate(
        flops=2 * T * B_pad * H * H,
        transcendentals=T * B_pad * H,
        bytes_accessed=4 * (2 * T * B_pad * H + H * H),
    )

    wh_t = jnp.transpose(w_hid32)                                # (H, H) = W_hid^T

    h_all = pl.pallas_call(
        kernel,
        out_shape=jax.ShapeDtypeStruct((T, B_pad, H), jnp.float32),
        grid_spec=pltpu.PrefetchScalarGridSpec(
            num_scalar_prefetch=0,
            grid=grid,
            in_specs=[
                pl.BlockSpec((tc, B_pad, H), lambda c: (c, 0, 0)),  # pre_in chunk
                pl.BlockSpec((H, H), lambda c: (0, 0)),             # W_hid^T (const)
            ],
            out_specs=pl.BlockSpec((tc, B_pad, H), lambda c: (c, 0, 0)),
            scratch_shapes=[pltpu.VMEM((B_pad, H), jnp.float32)],   # carried hidden
        ),
        compiler_params=pltpu.CompilerParams(
            # Sequential recurrence over time chunks: must stay "arbitrary".
            dimension_semantics=("arbitrary",),
        ),
        cost_estimate=cost,
    )(pre_in, wh_t)

    # --- hoisted output projection: one (T*B, H) x (H, O) GEMM, with the
    #     transpose back to (B, T, O) folded into the einsum output layout.
    y = jnp.einsum('tbh,oh->bto', h_all[:, :B, :], w_out32) + bo32
    return y


def liquid_rnn_reference(x, w_in, w_hid, bias, w_out, b_out, *, tau=0.1):
    """Pure-JAX reference mirroring the PyTorch forward exactly."""
    B, T, I = x.shape
    H = w_hid.shape[0]
    h = jnp.zeros((B, H), dtype=jnp.float32)
    outs = []
    for t in range(T):
        pre = x[:, t, :] @ w_in.T + h @ w_hid.T + bias
        h = (1.0 - tau) * h + tau * jnp.tanh(pre)
        outs.append(h @ w_out.T + b_out)
    return jnp.stack(outs, axis=1)


if __name__ == "__main__":
    # Shapes from the module's cpu_forward_pass_example:
    # input=128, hidden=256, output=128, batch=2, seq=10.
    batch_size = 2
    seq_len = 10
    input_size = 128
    hidden_size = 256
    output_size = 128
    tau = 0.1

    key = jax.random.PRNGKey(0)
    k_x, k_wi, k_wh, k_wo, k_bo = jax.random.split(key, 5)

    x = jax.random.normal(k_x, (batch_size, seq_len, input_size), dtype=jnp.float32)

    # LiquidNeuron params: randn weights, zero bias (as in __init__).
    w_in = jax.random.normal(k_wi, (hidden_size, input_size), dtype=jnp.float32)
    w_hid = jax.random.normal(k_wh, (hidden_size, hidden_size), dtype=jnp.float32)
    bias = jnp.zeros((hidden_size,), dtype=jnp.float32)

    # nn.Linear(hidden, output)-style deterministic init.
    lim = 1.0 / jnp.sqrt(hidden_size)
    w_out = jax.random.uniform(k_wo, (output_size, hidden_size),
                               minval=-lim, maxval=lim, dtype=jnp.float32)
    b_out = jax.random.uniform(k_bo, (output_size,),
                               minval=-lim, maxval=lim, dtype=jnp.float32)

    out = liquid_rnn_forward(x, w_in, w_hid, bias, w_out, b_out, tau=tau)
    out = jax.block_until_ready(out)

    ref = liquid_rnn_reference(x, w_in, w_hid, bias, w_out, b_out, tau=tau)
    assert out.shape == (batch_size, seq_len, output_size), out.shape
    assert jnp.allclose(out, ref, atol=1e-4, rtol=1e-4), (
        float(jnp.max(jnp.abs(out - ref))))

    print("KERNEL_OK")
</pallas_src>

<mosaic_0001>
module attributes {stable_mosaic.version = 11 : i64} {
  func.func @_liquid_recurrence_kernel(%arg0: i32, %arg1: memref<10x8x256xf32, #tpu.memory_space<vmem>>, %arg2: memref<256x256xf32, #tpu.memory_space<vmem>>, %arg3: memref<10x8x256xf32, #tpu.memory_space<vmem>>, %arg4: memref<8x256xf32, #tpu.memory_space<vmem>>) attributes {dimension_semantics = [#tpu.dimension_semantics<arbitrary>], iteration_bounds = array<i64: 1>, scalar_prefetch = 0 : i64, scratch_operands = 1 : i64, tpu.core_type = #tpu.core_type<tc>, window_params = [{transform_indices = @transform_0, window_bounds = array<i64: 10, 8, 256>}, {pipeline_mode = #tpu.pipeline_mode<synchronous>, transform_indices = @transform_1, window_bounds = array<i64: 256, 256>}, {transform_indices = @transform_2, window_bounds = array<i64: 10, 8, 256>}]} {
    %c0_i32 = arith.constant 0 : i32
    %0 = arith.cmpi eq, %arg0, %c0_i32 : i32
    %1 = arith.extui %0 : i1 to i32
    %c0_i32_0 = arith.constant 0 : i32
    %2 = arith.cmpi ne, %1, %c0_i32_0 : i32
    scf.if %2 {
      %cst_94 = arith.constant 0.000000e+00 : f32
      %165 = vector.broadcast %cst_94 : f32 to vector<8x256xf32>
      %c0_95 = arith.constant 0 : index
      %c0_96 = arith.constant 0 : index
      %166 = vector.load %arg4[%c0_95, %c0_96] : memref<8x256xf32, #tpu.memory_space<vmem>>, vector<8x256xf32>
      tpu.vector_store %arg4[%c0_95, %c0_96], %165 {strides = array<i32>} : memref<8x256xf32, #tpu.memory_space<vmem>>, vector<8x256xf32>,
    } else {
    }
    %c0 = arith.constant 0 : index
    %c0_1 = arith.constant 0 : index
    %3 = vector.load %arg4[%c0, %c0_1] : memref<8x256xf32, #tpu.memory_space<vmem>>, vector<8x256xf32>
    %c0_i32_2 = arith.constant 0 : i32
    %4 = arith.index_cast %c0_i32_2 : i32 to index
    %c0_3 = arith.constant 0 : index
    %c0_4 = arith.constant 0 : index
    %5 = vector.load %arg1[%4, %c0_3, %c0_4] : memref<10x8x256xf32, #tpu.memory_space<vmem>>, vector<1x8x256xf32>
    %6 = vector.shape_cast %5 : vector<1x8x256xf32> to vector<8x256xf32>
    %c0_5 = arith.constant 0 : index
    %c0_6 = arith.constant 0 : index
    %7 = vector.load %arg2[%c0_5, %c0_6] : memref<256x256xf32, #tpu.memory_space<vmem>>, vector<256x256xf32>
    %cst = arith.constant dense<0.000000e+00> : vector<8x256xf32>
    %8 = tpu.matmul %3, %7, %cst {dimension_numbers = #tpu.dot_dimension_numbers<[1], [0], [0], [1], [0, 0, 1, 1], [], []>} : vector<8x256xf32>, vector<256x256xf32>, vector<8x256xf32> -> vector<8x256xf32>
    %9 = arith.addf %6, %8 : vector<8x256xf32>
    %cst_7 = arith.constant 0.899999976 : f32
    %10 = vector.broadcast %cst_7 : f32 to vector<8x256xf32>
    %11 = arith.mulf %10, %3 : vector<8x256xf32>
    %12 = math.tanh %9 : vector<8x256xf32>
    %cst_8 = arith.constant 1.000000e-01 : f32
    %13 = vector.broadcast %cst_8 : f32 to vector<8x256xf32>
    %14 = arith.mulf %13, %12 : vector<8x256xf32>
    %15 = arith.addf %11, %14 : vector<8x256xf32>
    %16 = arith.index_cast %c0_i32_2 : i32 to index
    %c0_9 = arith.constant 0 : index
    %c0_10 = arith.constant 0 : index
    %17 = vector.load %arg3[%16, %c0_9, %c0_10] : memref<10x8x256xf32, #tpu.memory_space<vmem>>, vector<1x8x256xf32>
    %18 = vector.shape_cast %17 : vector<1x8x256xf32> to vector<8x256xf32>
    %19 = vector.shape_cast %15 : vector<8x256xf32> to vector<1x8x256xf32>
    tpu.vector_store %arg3[%16, %c0_9, %c0_10], %19 {strides = array<i32>} : memref<10x8x256xf32, #tpu.memory_space<vmem>>, vector<1x8x256xf32>,
    %c1_i32 = arith.constant 1 : i32
    %20 = arith.index_cast %c1_i32 : i32 to index
    %c0_11 = arith.constant 0 : index
    %c0_12 = arith.constant 0 : index
    %21 = vector.load %arg1[%20, %c0_11, %c0_12] : memref<10x8x256xf32, #tpu.memory_space<vmem>>, vector<1x8x256xf32>
    %22 = vector.shape_cast %21 : vector<1x8x256xf32> to vector<8x256xf32>
    %c0_13 = arith.constant 0 : index
    %c0_14 = arith.constant 0 : index
    %23 = vector.load %arg2[%c0_13, %c0_14] : memref<256x256xf32, #tpu.memory_space<vmem>>, vector<256x256xf32>
    %cst_15 = arith.constant dense<0.000000e+00> : vector<8x256xf32>
    %24 = tpu.matmul %15, %23, %cst_15 {dimension_numbers = #tpu.dot_dimension_numbers<[1], [0], [0], [1], [0, 0, 1, 1], [], []>} : vector<8x256xf32>, vector<256x256xf32>, vector<8x256xf32> -> vector<8x256xf32>
    %25 = arith.addf %22, %24 : vector<8x256xf32>
    %cst_16 = arith.constant 0.899999976 : f32
    %26 = vector.broadcast %cst_16 : f32 to vector<8x256xf32>
    %27 = arith.mulf %26, %15 : vector<8x256xf32>
    %28 = math.tanh %25 : vector<8x256xf32>
    %cst_17 = arith.constant 1.000000e-01 : f32
    %29 = vector.broadcast %cst_17 : f32 to vector<8x256xf32>
    %30 = arith.mulf %29, %28 : vector<8x256xf32>
    %31 = arith.addf %27, %30 : vector<8x256xf32>
    %32 = arith.index_cast %c1_i32 : i32 to index
    %c0_18 = arith.constant 0 : index
    %c0_19 = arith.constant 0 : index
    %33 = vector.load %arg3[%32, %c0_18, %c0_19] : memref<10x8x256xf32, #tpu.memory_space<vmem>>, vector<1x8x256xf32>
    %34 = vector.shape_cast %33 : vector<1x8x256xf32> to vector<8x256xf32>
    %35 = vector.shape_cast %31 : vector<8x256xf32> to vector<1x8x256xf32>
    tpu.vector_store %arg3[%32, %c0_18, %c0_19], %35 {strides = array<i32>} : memref<10x8x256xf32, #tpu.memory_space<vmem>>, vector<1x8x256xf32>,
    %c2_i32 = arith.constant 2 : i32
    %36 = arith.index_cast %c2_i32 : i32 to index
    %c0_20 = arith.constant 0 : index
    %c0_21 = arith.constant 0 : index
    %37 = vector.load %arg1[%36, %c0_20, %c0_21] : memref<10x8x256xf32, #tpu.memory_space<vmem>>, vector<1x8x256xf32>
    %38 = vector.shape_cast %37 : vector<1x8x256xf32> to vector<8x256xf32>
    %c0_22 = arith.constant 0 : index
    %c0_23 = arith.constant 0 : index
    %39 = vector.load %arg2[%c0_22, %c0_23] : memref<256x256xf32, #tpu.memory_space<vmem>>, vector<256x256xf32>
    %cst_24 = arith.constant dense<0.000000e+00> : vector<8x256xf32>
    %40 = tpu.matmul %31, %39, %cst_24 {dimension_numbers = #tpu.dot_dimension_numbers<[1], [0], [0], [1], [0, 0, 1, 1], [], []>} : vector<8x256xf32>, vector<256x256xf32>, vector<8x256xf32> -> vector<8x256xf32>
    %41 = arith.addf %38, %40 : vector<8x256xf32>
    %cst_25 = arith.constant 0.899999976 : f32
    %42 = vector.broadcast %cst_25 : f32 to vector<8x256xf32>
    %43 = arith.mulf %42, %31 : vector<8x256xf32>
    %44 = math.tanh %41 : vector<8x256xf32>
    %cst_26 = arith.constant 1.000000e-01 : f32
    %45 = vector.broadcast %cst_26 : f32 to vector<8x256xf32>
    %46 = arith.mulf %45, %44 : vector<8x256xf32>
    %47 = arith.addf %43, %46 : vector<8x256xf32>
    %48 = arith.index_cast %c2_i32 : i32 to index
    %c0_27 = arith.constant 0 : index
    %c0_28 = arith.constant 0 : index
    %49 = vector.load %arg3[%48, %c0_27, %c0_28] : memref<10x8x256xf32, #tpu.memory_space<vmem>>, vector<1x8x256xf32>
    %50 = vector.shape_cast %49 : vector<1x8x256xf32> to vector<8x256xf32>
    %51 = vector.shape_cast %47 : vector<8x256xf32> to vector<1x8x256xf32>
    tpu.vector_store %arg3[%48, %c0_27, %c0_28], %51 {strides = array<i32>} : memref<10x8x256xf32, #tpu.memory_space<vmem>>, vector<1x8x256xf32>,
    %c3_i32 = arith.constant 3 : i32
    %52 = arith.index_cast %c3_i32 : i32 to index
    %c0_29 = arith.constant 0 : index
    %c0_30 = arith.constant 0 : index
    %53 = vector.load %arg1[%52, %c0_29, %c0_30] : memref<10x8x256xf32, #tpu.memory_space<vmem>>, vector<1x8x256xf32>
    %54 = vector.shape_cast %53 : vector<1x8x256xf32> to vector<8x256xf32>
    %c0_31 = arith.constant 0 : index
    %c0_32 = arith.constant 0 : index
    %55 = vector.load %arg2[%c0_31, %c0_32] : memref<256x256xf32, #tpu.memory_space<vmem>>, vector<256x256xf32>
    %cst_33 = arith.constant dense<0.000000e+00> : vector<8x256xf32>
    %56 = tpu.matmul %47, %55, %cst_33 {dimension_numbers = #tpu.dot_dimension_numbers<[1], [0], [0], [1], [0, 0, 1, 1], [], []>} : vector<8x256xf32>, vector<256x256xf32>, vector<8x256xf32> -> vector<8x256xf32>
    %57 = arith.addf %54, %56 : vector<8x256xf32>
    %cst_34 = arith.constant 0.899999976 : f32
    %58 = vector.broadcast %cst_34 : f32 to vector<8x256xf32>
    %59 = arith.mulf %58, %47 : vector<8x256xf32>
    %60 = math.tanh %57 : vector<8x256xf32>
    %cst_35 = arith.constant 1.000000e-01 : f32
    %61 = vector.broadcast %cst_35 : f32 to vector<8x256xf32>
    %62 = arith.mulf %61, %60 : vector<8x256xf32>
    %63 = arith.addf %59, %62 : vector<8x256xf32>
    %64 = arith.index_cast %c3_i32 : i32 to index
    %c0_36 = arith.constant 0 : index
    %c0_37 = arith.constant 0 : index
    %65 = vector.load %arg3[%64, %c0_36, %c0_37] : memref<10x8x256xf32, #tpu.memory_space<vmem>>, vector<1x8x256xf32>
    %66 = vector.shape_cast %65 : vector<1x8x256xf32> to vector<8x256xf32>
    %67 = vector.shape_cast %63 : vector<8x256xf32> to vector<1x8x256xf32>
    tpu.vector_store %arg3[%64, %c0_36, %c0_37], %67 {strides = array<i32>} : memref<10x8x256xf32, #tpu.memory_space<vmem>>, vector<1x8x256xf32>,
    %c4_i32 = arith.constant 4 : i32
    %68 = arith.index_cast %c4_i32 : i32 to index
    %c0_38 = arith.constant 0 : index
    %c0_39 = arith.constant 0 : index
    %69 = vector.load %arg1[%68, %c0_38, %c0_39] : memref<10x8x256xf32, #tpu.memory_space<vmem>>, vector<1x8x256xf32>
    %70 = vector.shape_cast %69 : vector<1x8x256xf32> to vector<8x256xf32>
    %c0_40 = arith.constant 0 : index
    %c0_41 = arith.constant 0 : index
    %71 = vector.load %arg2[%c0_40, %c0_41] : memref<256x256xf32, #tpu.memory_space<vmem>>, vector<256x256xf32>
    %cst_42 = arith.constant dense<0.000000e+00> : vector<8x256xf32>
    %72 = tpu.matmul %63, %71, %cst_42 {dimension_numbers = #tpu.dot_dimension_numbers<[1], [0], [0], [1], [0, 0, 1, 1], [], []>} : vector<8x256xf32>, vector<256x256xf32>, vector<8x256xf32> -> vector<8x256xf32>
    %73 = arith.addf %70, %72 : vector<8x256xf32>
    %cst_43 = arith.constant 0.899999976 : f32
    %74 = vector.broadcast %cst_43 : f32 to vector<8x256xf32>
    %75 = arith.mulf %74, %63 : vector<8x256xf32>
    %76 = math.tanh %73 : vector<8x256xf32>
    %cst_44 = arith.constant 1.000000e-01 : f32
    %77 = vector.broadcast %cst_44 : f32 to vector<8x256xf32>
    %78 = arith.mulf %77, %76 : vector<8x256xf32>
    %79 = arith.addf %75, %78 : vector<8x256xf32>
    %80 = arith.index_cast %c4_i32 : i32 to index
    %c0_45 = arith.constant 0 : index
    %c0_46 = arith.constant 0 : index
    %81 = vector.load %arg3[%80, %c0_45, %c0_46] : memref<10x8x256xf32, #tpu.memory_space<vmem>>, vector<1x8x256xf32>
    %82 = vector.shape_cast %81 : vector<1x8x256xf32> to vector<8x256xf32>
    %83 = vector.shape_cast %79 : vector<8x256xf32> to vector<1x8x256xf32>
    tpu.vector_store %arg3[%80, %c0_45, %c0_46], %83 {strides = array<i32>} : memref<10x8x256xf32, #tpu.memory_space<vmem>>, vector<1x8x256xf32>,
    %c5_i32 = arith.constant 5 : i32
    %84 = arith.index_cast %c5_i32 : i32 to index
    %c0_47 = arith.constant 0 : index
    %c0_48 = arith.constant 0 : index
    %85 = vector.load %arg1[%84, %c0_47, %c0_48] : memref<10x8x256xf32, #tpu.memory_space<vmem>>, vector<1x8x256xf32>
    %86 = vector.shape_cast %85 : vector<1x8x256xf32> to vector<8x256xf32>
    %c0_49 = arith.constant 0 : index
    %c0_50 = arith.constant 0 : index
    %87 = vector.load %arg2[%c0_49, %c0_50] : memref<256x256xf32, #tpu.memory_space<vmem>>, vector<256x256xf32>
    %cst_51 = arith.constant dense<0.000000e+00> : vector<8x256xf32>
    %88 = tpu.matmul %79, %87, %cst_51 {dimension_numbers = #tpu.dot_dimension_numbers<[1], [0], [0], [1], [0, 0, 1, 1], [], []>} : vector<8x256xf32>, vector<256x256xf32>, vector<8x256xf32> -> vector<8x256xf32>
    %89 = arith.addf %86, %88 : vector<8x256xf32>
    %cst_52 = arith.constant 0.899999976 : f32
    %90 = vector.broadcast %cst_52 : f32 to vector<8x256xf32>
    %91 = arith.mulf %90, %79 : vector<8x256xf32>
    %92 = math.tanh %89 : vector<8x256xf32>
    %cst_53 = arith.constant 1.000000e-01 : f32
    %93 = vector.broadcast %cst_53 : f32 to vector<8x256xf32>
    %94 = arith.mulf %93, %92 : vector<8x256xf32>
    %95 = arith.addf %91, %94 : vector<8x256xf32>
    %96 = arith.index_cast %c5_i32 : i32 to index
    %c0_54 = arith.constant 0 : index
    %c0_55 = arith.constant 0 : index
    %97 = vector.load %arg3[%96, %c0_54, %c0_55] : memref<10x8x256xf32, #tpu.memory_space<vmem>>, vector<1x8x256xf32>
    %98 = vector.shape_cast %97 : vector<1x8x256xf32> to vector<8x256xf32>
    %99 = vector.shape_cast %95 : vector<8x256xf32> to vector<1x8x256xf32>
    tpu.vector_store %arg3[%96, %c0_54, %c0_55], %99 {strides = array<i32>} : memref<10x8x256xf32, #tpu.memory_space<vmem>>, vector<1x8x256xf32>,
    %c6_i32 = arith.constant 6 : i32
    %100 = arith.index_cast %c6_i32 : i32 to index
    %c0_56 = arith.constant 0 : index
    %c0_57 = arith.constant 0 : index
    %101 = vector.load %arg1[%100, %c0_56, %c0_57] : memref<10x8x256xf32, #tpu.memory_space<vmem>>, vector<1x8x256xf32>
    %102 = vector.shape_cast %101 : vector<1x8x256xf32> to vector<8x256xf32>
    %c0_58 = arith.constant 0 : index
    %c0_59 = arith.constant 0 : index
    %103 = vector.load %arg2[%c0_58, %c0_59] : memref<256x256xf32, #tpu.memory_space<vmem>>, vector<256x256xf32>
    %cst_60 = arith.constant dense<0.000000e+00> : vector<8x256xf32>
    %104 = tpu.matmul %95, %103, %cst_60 {dimension_numbers = #tpu.dot_dimension_numbers<[1], [0], [0], [1], [0, 0, 1, 1], [], []>} : vector<8x256xf32>, vector<256x256xf32>, vector<8x256xf32> -> vector<8x256xf32>
    %105 = arith.addf %102, %104 : vector<8x256xf32>
    %cst_61 = arith.constant 0.899999976 : f32
    %106 = vector.broadcast %cst_61 : f32 to vector<8x256xf32>
    %107 = arith.mulf %106, %95 : vector<8x256xf32>
    %108 = math.tanh %105 : vector<8x256xf32>
    %cst_62 = arith.constant 1.000000e-01 : f32
    %109 = vector.broadcast %cst_62 : f32 to vector<8x256xf32>
    %110 = arith.mulf %109, %108 : vector<8x256xf32>
    %111 = arith.addf %107, %110 : vector<8x256xf32>
    %112 = arith.index_cast %c6_i32 : i32 to index
    %c0_63 = arith.constant 0 : index
    %c0_64 = arith.constant 0 : index
    %113 = vector.load %arg3[%112, %c0_63, %c0_64] : memref<10x8x256xf32, #tpu.memory_space<vmem>>, vector<1x8x256xf32>
    %114 = vector.shape_cast %113 : vector<1x8x256xf32> to vector<8x256xf32>
    %115 = vector.shape_cast %111 : vector<8x256xf32> to vector<1x8x256xf32>
    tpu.vector_store %arg3[%112, %c0_63, %c0_64], %115 {strides = array<i32>} : memref<10x8x256xf32, #tpu.memory_space<vmem>>, vector<1x8x256xf32>,
    %c7_i32 = arith.constant 7 : i32
    %116 = arith.index_cast %c7_i32 : i32 to index
    %c0_65 = arith.constant 0 : index
    %c0_66 = arith.constant 0 : index
    %117 = vector.load %arg1[%116, %c0_65, %c0_66] : memref<10x8x256xf32, #tpu.memory_space<vmem>>, vector<1x8x256xf32>
    %118 = vector.shape_cast %117 : vector<1x8x256xf32> to vector<8x256xf32>
    %c0_67 = arith.constant 0 : index
    %c0_68 = arith.constant 0 : index
    %119 = vector.load %arg2[%c0_67, %c0_68] : memref<256x256xf32, #tpu.memory_space<vmem>>, vector<256x256xf32>
    %cst_69 = arith.constant dense<0.000000e+00> : vector<8x256xf32>
    %120 = tpu.matmul %111, %119, %cst_69 {dimension_numbers = #tpu.dot_dimension_numbers<[1], [0], [0], [1], [0, 0, 1, 1], [], []>} : vector<8x256xf32>, vector<256x256xf32>, vector<8x256xf32> -> vector<8x256xf32>
    %121 = arith.addf %118, %120 : vector<8x256xf32>
    %cst_70 = arith.constant 0.899999976 : f32
    %122 = vector.broadcast %cst_70 : f32 to vector<8x256xf32>
    %123 = arith.mulf %122, %111 : vector<8x256xf32>
    %124 = math.tanh %121 : vector<8x256xf32>
    %cst_71 = arith.constant 1.000000e-01 : f32
    %125 = vector.broadcast %cst_71 : f32 to vector<8x256xf32>
    %126 = arith.mulf %125, %124 : vector<8x256xf32>
    %127 = arith.addf %123, %126 : vector<8x256xf32>
    %128 = arith.index_cast %c7_i32 : i32 to index
    %c0_72 = arith.constant 0 : index
    %c0_73 = arith.constant 0 : index
    %129 = vector.load %arg3[%128, %c0_72, %c0_73] : memref<10x8x256xf32, #tpu.memory_space<vmem>>, vector<1x8x256xf32>
    %130 = vector.shape_cast %129 : vector<1x8x256xf32> to vector<8x256xf32>
    %131 = vector.shape_cast %127 : vector<8x256xf32> to vector<1x8x256xf32>
    tpu.vector_store %arg3[%128, %c0_72, %c0_73], %131 {strides = array<i32>} : memref<10x8x256xf32, #tpu.memory_space<vmem>>, vector<1x8x256xf32>,
    %c8_i32 = arith.constant 8 : i32
    %132 = arith.index_cast %c8_i32 : i32 to index
    %c0_74 = arith.constant 0 : index
    %c0_75 = arith.constant 0 : index
    %133 = vector.load %arg1[%132, %c0_74, %c0_75] : memref<10x8x256xf32, #tpu.memory_space<vmem>>, vector<1x8x256xf32>
    %134 = vector.shape_cast %133 : vector<1x8x256xf32> to vector<8x256xf32>
    %c0_76 = arith.constant 0 : index
    %c0_77 = arith.constant 0 : index
    %135 = vector.load %arg2[%c0_76, %c0_77] : memref<256x256xf32, #tpu.memory_space<vmem>>, vector<256x256xf32>
    %cst_78 = arith.constant dense<0.000000e+00> : vector<8x256xf32>
    %136 = tpu.matmul %127, %135, %cst_78 {dimension_numbers = #tpu.dot_dimension_numbers<[1], [0], [0], [1], [0, 0, 1, 1], [], []>} : vector<8x256xf32>, vector<256x256xf32>, vector<8x256xf32> -> vector<8x256xf32>
    %137 = arith.addf %134, %136 : vector<8x256xf32>
    %cst_79 = arith.constant 0.899999976 : f32
    %138 = vector.broadcast %cst_79 : f32 to vector<8x256xf32>
    %139 = arith.mulf %138, %127 : vector<8x256xf32>
    %140 = math.tanh %137 : vector<8x256xf32>
    %cst_80 = arith.constant 1.000000e-01 : f32
    %141 = vector.broadcast %cst_80 : f32 to vector<8x256xf32>
    %142 = arith.mulf %141, %140 : vector<8x256xf32>
    %143 = arith.addf %139, %142 : vector<8x256xf32>
    %144 = arith.index_cast %c8_i32 : i32 to index
    %c0_81 = arith.constant 0 : index
    %c0_82 = arith.constant 0 : index
    %145 = vector.load %arg3[%144, %c0_81, %c0_82] : memref<10x8x256xf32, #tpu.memory_space<vmem>>, vector<1x8x256xf32>
    %146 = vector.shape_cast %145 : vector<1x8x256xf32> to vector<8x256xf32>
    %147 = vector.shape_cast %143 : vector<8x256xf32> to vector<1x8x256xf32>
    tpu.vector_store %arg3[%144, %c0_81, %c0_82], %147 {strides = array<i32>} : memref<10x8x256xf32, #tpu.memory_space<vmem>>, vector<1x8x256xf32>,
    %c9_i32 = arith.constant 9 : i32
    %148 = arith.index_cast %c9_i32 : i32 to index
    %c0_83 = arith.constant 0 : index
    %c0_84 = arith.constant 0 : index
    %149 = vector.load %arg1[%148, %c0_83, %c0_84] : memref<10x8x256xf32, #tpu.memory_space<vmem>>, vector<1x8x256xf32>
    %150 = vector.shape_cast %149 : vector<1x8x256xf32> to vector<8x256xf32>
    %c0_85 = arith.constant 0 : index
    %c0_86 = arith.constant 0 : index
    %151 = vector.load %arg2[%c0_85, %c0_86] : memref<256x256xf32, #tpu.memory_space<vmem>>, vector<256x256xf32>
    %cst_87 = arith.constant dense<0.000000e+00> : vector<8x256xf32>
    %152 = tpu.matmul %143, %151, %cst_87 {dimension_numbers = #tpu.dot_dimension_numbers<[1], [0], [0], [1], [0, 0, 1, 1], [], []>} : vector<8x256xf32>, vector<256x256xf32>, vector<8x256xf32> -> vector<8x256xf32>
    %153 = arith.addf %150, %152 : vector<8x256xf32>
    %cst_88 = arith.constant 0.899999976 : f32
    %154 = vector.broadcast %cst_88 : f32 to vector<8x256xf32>
    %155 = arith.mulf %154, %143 : vector<8x256xf32>
    %156 = math.tanh %153 : vector<8x256xf32>
    %cst_89 = arith.constant 1.000000e-01 : f32
    %157 = vector.broadcast %cst_89 : f32 to vector<8x256xf32>
    %158 = arith.mulf %157, %156 : vector<8x256xf32>
    %159 = arith.addf %155, %158 : vector<8x256xf32>
    %160 = arith.index_cast %c9_i32 : i32 to index
    %c0_90 = arith.constant 0 : index
    %c0_91 = arith.constant 0 : index
    %161 = vector.load %arg3[%160, %c0_90, %c0_91] : memref<10x8x256xf32, #tpu.memory_space<vmem>>, vector<1x8x256xf32>
    %162 = vector.shape_cast %161 : vector<1x8x256xf32> to vector<8x256xf32>
    %163 = vector.shape_cast %159 : vector<8x256xf32> to vector<1x8x256xf32>
    tpu.vector_store %arg3[%160, %c0_90, %c0_91], %163 {strides = array<i32>} : memref<10x8x256xf32, #tpu.memory_space<vmem>>, vector<1x8x256xf32>,
    %c10_i32 = arith.constant 10 : i32
    %c0_92 = arith.constant 0 : index
    %c0_93 = arith.constant 0 : index
    %164 = vector.load %arg4[%c0_92, %c0_93] : memref<8x256xf32, #tpu.memory_space<vmem>>, vector<8x256xf32>
    tpu.vector_store %arg4[%c0_92, %c0_93], %159 {strides = array<i32>} : memref<8x256xf32, #tpu.memory_space<vmem>>, vector<8x256xf32>,
    return
  }
  func.func @transform_0(%arg0: i32) -> (i32, i32, i32) {
    %c0_i32 = arith.constant 0 : i32
    %c0_i32_0 = arith.constant 0 : i32
    %c0_i32_1 = arith.constant 0 : i32
    return %arg0, %c0_i32, %c0_i32_0 : i32, i32, i32
  }
  func.func @transform_1(%arg0: i32) -> (i32, i32) {
    %c0_i32 = arith.constant 0 : i32
    %c0_i32_0 = arith.constant 0 : i32
    %c0_i32_1 = arith.constant 0 : i32
    return %c0_i32, %c0_i32_0 : i32, i32
  }
  func.func @transform_2(%arg0: i32) -> (i32, i32, i32) {
    %c0_i32 = arith.constant 0 : i32
    %c0_i32_0 = arith.constant 0 : i32
    %c0_i32_1 = arith.constant 0 : i32
    return %arg0, %c0_i32, %c0_i32_0 : i32, i32, i32
  }
}

</mosaic_0001>

<llo_original>
// kernel: tpu_custom_call.1
$region0: #{tpu_custom_call.1}
  #allocation0 [shape = 'u32[]', space=smem, size = 0x4, offset = 0x4, fixed_abs, tag = 'smem constant byte address 0x4 - core index']
  #allocation1 [shape = 'u32[144,128]{1,0:T(1,128)}', space=vmem, size = 0x12000, scoped, tag = 'internal scratch']
  #allocation2 [shape = 'f32[8,256]{1,0:T(8,128)}', space=vmem, size = 0x2000, scoped, tag = 'scratch operand']
  %s0 = inlined_call_operand.hbm [shape: f32[10,8,256], index: 0, kind: input, shape index: {}]
  %s1 = inlined_call_operand.hbm [shape: f32[256,256], index: 1, kind: input, shape index: {}]
  %s2 = inlined_call_operand.hbm [shape: f32[10,8,256], index: 2, kind: output, shape index: {}]
  %s3 = sld [smem:[#allocation0]]
  $region30: #{tpu_custom_call.1} parent=0
    _
  %s5 = ssub.s32 1, %s3
  %s6 = scalar_select 0, %s5, %s3
  $region1: #{tpu_custom_call.1} parent=0
    #allocation3 [shape = 'u8[81920]{0}', space=vmem, size = 0x14000, scoped, tag = 'input window, operand 0, single buffered']
    #allocation4 [shape = 's32[1]{0}', space=sflag, size = 0x4, scoped, tag = 'scoped memory for tpu_custom_call.1']
    #allocation5 [shape = 's32[1]{0}', space=sflag, size = 0x4, scoped, tag = 'scoped memory for tpu_custom_call.1']
    #allocation6 [shape = 'u8[262144]{0}', space=vmem, size = 0x40000, scoped, tag = 'input window, operand 1, single buffered']
    #allocation7 [shape = 's32[1]{0}', space=sflag, size = 0x4, scoped, tag = 'scoped memory for tpu_custom_call.1']
    #allocation8 [shape = 'u8[81920]{0}', space=vmem, size = 0x14000, scoped, tag = 'output window, operand 0, single buffered']
    %7 = vsyncpa [#allocation4], 0
    %8 = vsyncpa [#allocation7], 0
    %9 = vsyncpa [#allocation5], 0
    // Predicated region
    $region2: #{tpu_custom_call.1} parent=1 // pred_check
      _
    $region3: #{tpu_custom_call.1} parent=1 // pred_check_branch
      %11 = sbr.rel (0) target = $region5
    $region4: #{tpu_custom_call.1} parent=1 // pred_region
      %s13 = ssub.s32 2560, 2560
      %14 = vsyncadd [#allocation4], %s13
      %s15 = sshll.u32 [#allocation3], 4
      %s16 = int_to_ptr.vmem [resolvable:$true] %s15
      %21 = dma.hbm_to_vmem [thread:$0]  %s0, 2560, %s16, [#allocation4], 256, 256, 16
    $region5: #{tpu_custom_call.1} parent=1 // pred_fallthru
      _
    // Predicated region
    $region6: #{tpu_custom_call.1} parent=1 // pred_check
      _
    $region7: #{tpu_custom_call.1} parent=1 // pred_check_branch
      %23 = sbr.rel (0) target = $region9
    $region8: #{tpu_custom_call.1} parent=1 // pred_region
      %s25 = ssub.s32 8192, 8192
      %26 = vsyncadd [#allocation7], %s25
      %s27 = sshll.u32 [#allocation6], 4
      %s28 = int_to_ptr.vmem [resolvable:$true] %s27
      %33 = dma.hbm_to_vmem [thread:$0]  %s1, 8192, %s28, [#allocation7], 256, 256, 16
    $region9: #{tpu_custom_call.1} parent=1 // pred_fallthru
      _
    // Predicated region
    $region10: #{tpu_custom_call.1} parent=1 // pred_check
      _
    $region11: #{tpu_custom_call.1} parent=1 // pred_check_branch
      %35 = sbr.rel (0) target = $region13
    $region12: #{tpu_custom_call.1} parent=1 // pred_region
      %36 = dma.done [#allocation4], 2560
    $region13: #{tpu_custom_call.1} parent=1 // pred_fallthru
      _
    // Predicated region
    $region14: #{tpu_custom_call.1} parent=1 // pred_check
      _
    $region15: #{tpu_custom_call.1} parent=1 // pred_check_branch
      %38 = sbr.rel (0) target = $region17
    $region16: #{tpu_custom_call.1} parent=1 // pred_region
      %39 = dma.done [#allocation7], 8192
    $region17: #{tpu_custom_call.1} parent=1 // pred_fallthru
      _
    %p40 = scmp.eq.s32.totalorder 0, 0
    // Predicated region
    $region18: #{tpu_custom_call.1} parent=1 // pred_check
      %p41 = pneg %p40
    $region19: #{tpu_custom_call.1} parent=1 // pred_check_branch
      %43 = sbr.rel (%p41) target = $region21
    $region20: #{tpu_custom_call.1} parent=1 // pred_region
      %44 = vst [vmem:[#allocation2] sm:$0xff] 0.0
      %45 = vst [vmem:[#allocation2 + $0x8] sm:$0xff] 0.0
    $region21: #{tpu_custom_call.1} parent=1 // pred_fallthru
      _
    %v46 = vld [vmem:[#allocation2] sm:$0xff]
    %v47 = vld [vmem:[#allocation2 + $0x8] sm:$0xff]
    %v48 = vld [vmem:[#allocation3] sm:$0xff]
    %v49 = vld [vmem:[#allocation3 + $0x8] sm:$0xff]
    %v50 = vld [vmem:[#allocation6] sm:$0xff]
    %v51 = vld [vmem:[#allocation6 + $0x8] sm:$0xff]
    %v52 = vld [vmem:[#allocation6 + $0x10] sm:$0xff]
    %v53 = vld [vmem:[#allocation6 + $0x18] sm:$0xff]
    %v54 = vld [vmem:[#allocation6 + $0x20] sm:$0xff]
    %v55 = vld [vmem:[#allocation6 + $0x28] sm:$0xff]
    %v56 = vld [vmem:[#allocation6 + $0x30] sm:$0xff]
    %v57 = vld [vmem:[#allocation6 + $0x38] sm:$0xff]
    %v58 = vld [vmem:[#allocation6 + $0x40] sm:$0xff]
    %v59 = vld [vmem:[#allocation6 + $0x48] sm:$0xff]
    %v60 = vld [vmem:[#allocation6 + $0x50] sm:$0xff]
    %v61 = vld [vmem:[#allocation6 + $0x58] sm:$0xff]
    %v62 = vld [vmem:[#allocation6 + $0x60] sm:$0xff]
    %v63 = vld [vmem:[#allocation6 + $0x68] sm:$0xff]
    %v64 = vld [vmem:[#allocation6 + $0x70] sm:$0xff]
    %v65 = vld [vmem:[#allocation6 + $0x78] sm:$0xff]
    %v66 = vld [vmem:[#allocation6 + $0x80] sm:$0xff]
    %v67 = vld [vmem:[#allocation6 + $0x88] sm:$0xff]
    %v68 = vld [vmem:[#allocation6 + $0x90] sm:$0xff]
    %v69 = vld [vmem:[#allocation6 + $0x98] sm:$0xff]
    %v70 = vld [vmem:[#allocation6 + $0xa0] sm:$0xff]
    %v71 = vld [vmem:[#allocation6 + $0xa8] sm:$0xff]
    %v72 = vld [vmem:[#allocation6 + $0xb0] sm:$0xff]
    %v73 = vld [vmem:[#allocation6 + $0xb8] sm:$0xff]
    %v74 = vld [vmem:[#allocation6 + $0xc0] sm:$0xff]
    %v75 = vld [vmem:[#allocation6 + $0xc8] sm:$0xff]
    %v76 = vld [vmem:[#allocation6 + $0xd0] sm:$0xff]
    %v77 = vld [vmem:[#allocation6 + $0xd8] sm:$0xff]
    %v78 = vld [vmem:[#allocation6 + $0xe0] sm:$0xff]
    %v79 = vld [vmem:[#allocation6 + $0xe8] sm:$0xff]
    %v80 = vld [vmem:[#allocation6 + $0xf0] sm:$0xff]
    %v81 = vld [vmem:[#allocation6 + $0xf8] sm:$0xff]
    %v82 = vld [vmem:[#allocation6 + $0x100] sm:$0xff]
    %v83 = vld [vmem:[#allocation6 + $0x108] sm:$0xff]
    %v84 = vld [vmem:[#allocation6 + $0x110] sm:$0xff]
    %v85 = vld [vmem:[#allocation6 + $0x118] sm:$0xff]
    %v86 = vld [vmem:[#allocation6 + $0x120] sm:$0xff]
    %v87 = vld [vmem:[#allocation6 + $0x128] sm:$0xff]
    %v88 = vld [vmem:[#allocation6 + $0x130] sm:$0xff]
    %v89 = vld [vmem:[#allocation6 + $0x138] sm:$0xff]
    %v90 = vld [vmem:[#allocation6 + $0x140] sm:$0xff]
    %v91 = vld [vmem:[#allocation6 + $0x148] sm:$0xff]
    %v92 = vld [vmem:[#allocation6 + $0x150] sm:$0xff]
    %v93 = vld [vmem:[#allocation6 + $0x158] sm:$0xff]
    %v94 = vld [vmem:[#allocation6 + $0x160] sm:$0xff]
    %v95 = vld [vmem:[#allocation6 + $0x168] sm:$0xff]
    %v96 = vld [vmem:[#allocation6 + $0x170] sm:$0xff]
    %v97 = vld [vmem:[#allocation6 + $0x178] sm:$0xff]
    %v98 = vld [vmem:[#allocation6 + $0x180] sm:$0xff]
    %v99 = vld [vmem:[#allocation6 + $0x188] sm:$0xff]
    %v100 = vld [vmem:[#allocation6 + $0x190] sm:$0xff]
    %v101 = vld [vmem:[#allocation6 + $0x198] sm:$0xff]
    %v102 = vld [vmem:[#allocation6 + $0x1a0] sm:$0xff]
    %v103 = vld [vmem:[#allocation6 + $0x1a8] sm:$0xff]
    %v104 = vld [vmem:[#allocation6 + $0x1b0] sm:$0xff]
    %v105 = vld [vmem:[#allocation6 + $0x1b8] sm:$0xff]
    %v106 = vld [vmem:[#allocation6 + $0x1c0] sm:$0xff]
    %v107 = vld [vmem:[#allocation6 + $0x1c8] sm:$0xff]
    %v108 = vld [vmem:[#allocation6 + $0x1d0] sm:$0xff]
    %v109 = vld [vmem:[#allocation6 + $0x1d8] sm:$0xff]
    %v110 = vld [vmem:[#allocation6 + $0x1e0] sm:$0xff]
    %v111 = vld [vmem:[#allocation6 + $0x1e8] sm:$0xff]
    %v112 = vld [vmem:[#allocation6 + $0x1f0] sm:$0xff]
    %v113 = vld [vmem:[#allocation6 + $0x1f8] sm:$0xff]
    %114 = vmatprep.subr.mxu0 %v51
    %115 = vmatpush1.msra.mxu0 %v50
    %116 = vmatprep.subr.mxu0 %v53
    %117 = vmatpush1.msra.mxu0 %v52
    %118 = vmatprep.subr.mxu0 %v55
    %119 = vmatpush1.msra.mxu0 %v54
    %120 = vmatprep.subr.mxu0 %v57
    %121 = vmatpush1.msra.mxu0 %v56
    %122 = vmatprep.subr.mxu0 %v59
    %123 = vmatpush1.msra.mxu0 %v58
    %124 = vmatprep.subr.mxu0 %v61
    %125 = vmatpush1.msra.mxu0 %v60
    %126 = vmatprep.subr.mxu0 %v63
    %127 = vmatpush1.msra.mxu0 %v62
    %128 = vmatprep.subr.mxu0 %v65
    %129 = vmatpush1.msra.mxu0 %v64
    %130 = vmatprep.subr.mxu0 %v67
    %131 = vmatpush1.msra.mxu0 %v66
    %132 = vmatprep.subr.mxu0 %v69
    %133 = vmatpush1.msra.mxu0 %v68
    %134 = vmatprep.subr.mxu0 %v71
    %135 = vmatpush1.msra.mxu0 %v70
    %136 = vmatprep.subr.mxu0 %v73
    %137 = vmatpush1.msra.mxu0 %v72
    %138 = vmatprep.subr.mxu0 %v75
    %139 = vmatpush1.msra.mxu0 %v74
    %140 = vmatprep.subr.mxu0 %v77
    %141 = vmatpush1.msra.mxu0 %v76
    %142 = vmatprep.subr.mxu0 %v79
    %143 = vmatpush1.msra.mxu0 %v78
    %144 = vmatprep.subr.mxu0 %v81
    %145 = vmatpush1.msra.mxu0 %v80
    %146 = vmatprep.subr.mxu0 %v83
    %147 = vmatpush1.msra.mxu0 %v82
    %148 = vmatprep.subr.mxu0 %v85
    %149 = vmatpush1.msra.mxu0 %v84
    %150 = vmatprep.subr.mxu0 %v87
    %151 = vmatpush1.msra.mxu0 %v86
    %152 = vmatprep.subr.mxu0 %v89
    %153 = vmatpush1.msra.mxu0 %v88
    %154 = vmatprep.subr.mxu0 %v91
    %155 = vmatpush1.msra.mxu0 %v90
    %156 = vmatprep.subr.mxu0 %v93
    %157 = vmatpush1.msra.mxu0 %v92
    %158 = vmatprep.subr.mxu0 %v95
    %159 = vmatpush1.msra.mxu0 %v94
    %160 = vmatprep.subr.mxu0 %v97
    %161 = vmatpush1.msra.mxu0 %v96
    %162 = vmatprep.subr.mxu0 %v99
    %163 = vmatpush1.msra.mxu0 %v98
    %164 = vmatprep.subr.mxu0 %v101
    %165 = vmatpush1.msra.mxu0 %v100
    %166 = vmatprep.subr.mxu0 %v103
    %167 = vmatpush1.msra.mxu0 %v102
    %168 = vmatprep.subr.mxu0 %v105
    %169 = vmatpush1.msra.mxu0 %v104
    %170 = vmatprep.subr.mxu0 %v107
    %171 = vmatpush1.msra.mxu0 %v106
    %172 = vmatprep.subr.mxu0 %v109
    %173 = vmatpush1.msra.mxu0 %v108
    %174 = vmatprep.subr.mxu0 %v111
    %175 = vmatpush1.msra.mxu0 %v110
    %176 = vmatprep.subr.mxu0 %v113
    %177 = vmatpush1.msra.mxu0 %v112
    %178 = vmatprep.mubr.f32.mxu0 %v47
    %179 = vmatmul.mubr.f32.gmra.mrb[0].mxu0 %v46
    %v180 = vpop.f32.mrb[0].mxu0
    %v181 = vadd.f32 0.0, %v180
    %v182 = vpop.f32.mrb[0].mxu0
    %v183 = vadd.f32 0.0, %v182
    %184 = vdwg.mxu0
    %v185 = vadd.f32 %v48, %v181
    %v186 = vadd.f32 %v49, %v183
    %v187 = vmul.f32 %v46, 0.9
    %v188 = vmul.f32 %v47, 0.9
    %v189 = vtanh.pop %v185
    %v190 = vtanh.pop %v186
    %v191 = vmul.f32 %v189, 0.1
    %v192 = vmul.f32 %v190, 0.1
    %v193 = vadd.f32 %v187, %v191
    %v194 = vadd.f32 %v188, %v192
    %195 = vst [vmem:[#allocation8] sm:$0xff] %v193
    %196 = vst [vmem:[#allocation8 + $0x8] sm:$0xff] %v194
    %s197 = scalar_lea.vmem [#allocation3], 16
    %v198 = vld [vmem:[%s197] sm:$0xff]
    %v199 = vld [vmem:[%s197 + $0x8] sm:$0xff]
    %v200 = vld [vmem:[#allocation6] sm:$0xff]
    %v201 = vld [vmem:[#allocation6 + $0x8] sm:$0xff]
    %v202 = vld [vmem:[#allocation6 + $0x10] sm:$0xff]
    %v203 = vld [vmem:[#allocation6 + $0x18] sm:$0xff]
    %v204 = vld [vmem:[#allocation6 + $0x20] sm:$0xff]
    %v205 = vld [vmem:[#allocation6 + $0x28] sm:$0xff]
    %v206 = vld [vmem:[#allocation6 + $0x30] sm:$0xff]
    %v207 = vld [vmem:[#allocation6 + $0x38] sm:$0xff]
    %v208 = vld [vmem:[#allocation6 + $0x40] sm:$0xff]
    %v209 = vld [vmem:[#allocation6 + $0x48] sm:$0xff]
    %v210 = vld [vmem:[#allocation6 + $0x50] sm:$0xff]
    %v211 = vld [vmem:[#allocation6 + $0x58] sm:$0xff]
    %v212 = vld [vmem:[#allocation6 + $0x60] sm:$0xff]
    %v213 = vld [vmem:[#allocation6 + $0x68] sm:$0xff]
    %v214 = vld [vmem:[#allocation6 + $0x70] sm:$0xff]
    %v215 = vld [vmem:[#allocation6 + $0x78] sm:$0xff]
    %v216 = vld [vmem:[#allocation6 + $0x80] sm:$0xff]
    %v217 = vld [vmem:[#allocation6 + $0x88] sm:$0xff]
    %v218 = vld [vmem:[#allocation6 + $0x90] sm:$0xff]
    %v219 = vld [vmem:[#allocation6 + $0x98] sm:$0xff]
    %v220 = vld [vmem:[#allocation6 + $0xa0] sm:$0xff]
    %v221 = vld [vmem:[#allocation6 + $0xa8] sm:$0xff]
    %v222 = vld [vmem:[#allocation6 + $0xb0] sm:$0xff]
    %v223 = vld [vmem:[#allocation6 + $0xb8] sm:$0xff]
    %v224 = vld [vmem:[#allocation6 + $0xc0] sm:$0xff]
    %v225 = vld [vmem:[#allocation6 + $0xc8] sm:$0xff]
    %v226 = vld [vmem:[#allocation6 + $0xd0] sm:$0xff]
    %v227 = vld [vmem:[#allocation6 + $0xd8] sm:$0xff]
    %v228 = vld [vmem:[#allocation6 + $0xe0] sm:$0xff]
    %v229 = vld [vmem:[#allocation6 + $0xe8] sm:$0xff]
    %v230 = vld [vmem:[#allocation6 + $0xf0] sm:$0xff]
    %v231 = vld [vmem:[#allocation6 + $0xf8] sm:$0xff]
    %v232 = vld [vmem:[#allocation6 + $0x100] sm:$0xff]
    %v233 = vld [vmem:[#allocation6 + $0x108] sm:$0xff]
    %v234 = vld [vmem:[#allocation6 + $0x110] sm:$0xff]
    %v235 = vld [vmem:[#allocation6 + $0x118] sm:$0xff]
    %v236 = vld [vmem:[#allocation6 + $0x120] sm:$0xff]
    %v237 = vld [vmem:[#allocation6 + $0x128] sm:$0xff]
    %v238 = vld [vmem:[#allocation6 + $0x130] sm:$0xff]
    %v239 = vld [vmem:[#allocation6 + $0x138] sm:$0xff]
    %v240 = vld [vmem:[#allocation6 + $0x140] sm:$0xff]
    %v241 = vld [vmem:[#allocation6 + $0x148] sm:$0xff]
    %v242 = vld [vmem:[#allocation6 + $0x150] sm:$0xff]
    %v243 = vld [vmem:[#allocation6 + $0x158] sm:$0xff]
    %v244 = vld [vmem:[#allocation6 + $0x160] sm:$0xff]
    %v245 = vld [vmem:[#allocation6 + $0x168] sm:$0xff]
    %v246 = vld [vmem:[#allocation6 + $0x170] sm:$0xff]
    %v247 = vld [vmem:[#allocation6 + $0x178] sm:$0xff]
    %v248 = vld [vmem:[#allocation6 + $0x180] sm:$0xff]
    %v249 = vld [vmem:[#allocation6 + $0x188] sm:$0xff]
    %v250 = vld [vmem:[#allocation6 + $0x190] sm:$0xff]
    %v251 = vld [vmem:[#allocation6 + $0x198] sm:$0xff]
    %v252 = vld [vmem:[#allocation6 + $0x1a0] sm:$0xff]
    %v253 = vld [vmem:[#allocation6 + $0x1a8] sm:$0xff]
    %v254 = vld [vmem:[#allocation6 + $0x1b0] sm:$0xff]
    %v255 = vld [vmem:[#allocation6 + $0x1b8] sm:$0xff]
    %v256 = vld [vmem:[#allocation6 + $0x1c0] sm:$0xff]
    %v257 = vld [vmem:[#allocation6 + $0x1c8] sm:$0xff]
    %v258 = vld [vmem:[#allocation6 + $0x1d0] sm:$0xff]
    %v259 = vld [vmem:[#allocation6 + $0x1d8] sm:$0xff]
    %v260 = vld [vmem:[#allocation6 + $0x1e0] sm:$0xff]
    %v261 = vld [vmem:[#allocation6 + $0x1e8] sm:$0xff]
    %v262 = vld [vmem:[#allocation6 + $0x1f0] sm:$0xff]
    %v263 = vld [vmem:[#allocation6 + $0x1f8] sm:$0xff]
    %264 = vmatprep.subr.mxu0 %v201
    %265 = vmatpush1.msra.mxu0 %v200
    %266 = vmatprep.subr.mxu0 %v203
    %267 = vmatpush1.msra.mxu0 %v202
    %268 = vmatprep.subr.mxu0 %v205
    %269 = vmatpush1.msra.mxu0 %v204
    %270 = vmatprep.subr.mxu0 %v207
    %271 = vmatpush1.msra.mxu0 %v206
    %272 = vmatprep.subr.mxu0 %v209
    %273 = vmatpush1.msra.mxu0 %v208
    %274 = vmatprep.subr.mxu0 %v211
    %275 = vmatpush1.msra.mxu0 %v210
    %276 = vmatprep.subr.mxu0 %v213
    %277 = vmatpush1.msra.mxu0 %v212
    %278 = vmatprep.subr.mxu0 %v215
    %279 = vmatpush1.msra.mxu0 %v214
    %280 = vmatprep.subr.mxu0 %v217
    %281 = vmatpush1.msra.mxu0 %v216
    %282 = vmatprep.subr.mxu0 %v219
    %283 = vmatpush1.msra.mxu0 %v218
    %284 = vmatprep.subr.mxu0 %v221
    %285 = vmatpush1.msra.mxu0 %v220
    %286 = vmatprep.subr.mxu0 %v223
    %287 = vmatpush1.msra.mxu0 %v222
    %288 = vmatprep.subr.mxu0 %v225
    %289 = vmatpush1.msra.mxu0 %v224
    %290 = vmatprep.subr.mxu0 %v227
    %291 = vmatpush1.msra.mxu0 %v226
    %292 = vmatprep.subr.mxu0 %v229
    %293 = vmatpush1.msra.mxu0 %v228
    %294 = vmatprep.subr.mxu0 %v231
    %295 = vmatpush1.msra.mxu0 %v230
    %296 = vmatprep.subr.mxu0 %v233
    %297 = vmatpush1.msra.mxu0 %v232
    %298 = vmatprep.subr.mxu0 %v235
    %299 = vmatpush1.msra.mxu0 %v234
    %300 = vmatprep.subr.mxu0 %v237
    %301 = vmatpush1.msra.mxu0 %v236
    %302 = vmatprep.subr.mxu0 %v239
    %303 = vmatpush1.msra.mxu0 %v238
    %304 = vmatprep.subr.mxu0 %v241
    %305 = vmatpush1.msra.mxu0 %v240
    %306 = vmatprep.subr.mxu0 %v243
    %307 = vmatpush1.msra.mxu0 %v242
    %308 = vmatprep.subr.mxu0 %v245
    %309 = vmatpush1.msra.mxu0 %v244
    %310 = vmatprep.subr.mxu0 %v247
    %311 = vmatpush1.msra.mxu0 %v246
    %312 = vmatprep.subr.mxu0 %v249
    %313 = vmatpush1.msra.mxu0 %v248
    %314 = vmatprep.subr.mxu0 %v251
    %315 = vmatpush1.msra.mxu0 %v250
    %316 = vmatprep.subr.mxu0 %v253
    %317 = vmatpush1.msra.mxu0 %v252
    %318 = vmatprep.subr.mxu0 %v255
    %319 = vmatpush1.msra.mxu0 %v254
    %320 = vmatprep.subr.mxu0 %v257
    %321 = vmatpush1.msra.mxu0 %v256
    %322 = vmatprep.subr.mxu0 %v259
    %323 = vmatpush1.msra.mxu0 %v258
    %324 = vmatprep.subr.mxu0 %v261
    %325 = vmatpush1.msra.mxu0 %v260
    %326 = vmatprep.subr.mxu0 %v263
    %327 = vmatpush1.msra.mxu0 %v262
    %328 = vmatprep.mubr.f32.mxu0 %v194
    %329 = vmatmul.mubr.f32.gmra.mrb[0].mxu0 %v193
    %v330 = vpop.f32.mrb[0].mxu0
    %v331 = vadd.f32 0.0, %v330
    %v332 = vpop.f32.mrb[0].mxu0
    %v333 = vadd.f32 0.0, %v332
    %334 = vdwg.mxu0
    %v335 = vadd.f32 %v198, %v331
    %v336 = vadd.f32 %v199, %v333
    %v337 = vmul.f32 %v193, 0.9
    %v338 = vmul.f32 %v194, 0.9
    %v339 = vtanh.pop %v335
    %v340 = vtanh.pop %v336
    %v341 = vmul.f32 %v339, 0.1
    %v342 = vmul.f32 %v340, 0.1
    %v343 = vadd.f32 %v337, %v341
    %v344 = vadd.f32 %v338, %v342
    %s345 = scalar_lea.vmem [#allocation8], 16
    %346 = vst [vmem:[%s345] sm:$0xff] %v343
    %347 = vst [vmem:[%s345 + $0x8] sm:$0xff] %v344
    %s348 = scalar_lea.vmem [#allocation3], 32
    %v349 = vld [vmem:[%s348] sm:$0xff]
    %v350 = vld [vmem:[%s348 + $0x8] sm:$0xff]
    %v351 = vld [vmem:[#allocation6] sm:$0xff]
    %v352 = vld [vmem:[#allocation6 + $0x8] sm:$0xff]
    %v353 = vld [vmem:[#allocation6 + $0x10] sm:$0xff]
    %v354 = vld [vmem:[#allocation6 + $0x18] sm:$0xff]
    %v355 = vld [vmem:[#allocation6 + $0x20] sm:$0xff]
    %v356 = vld [vmem:[#allocation6 + $0x28] sm:$0xff]
    %v357 = vld [vmem:[#allocation6 + $0x30] sm:$0xff]
    %v358 = vld [vmem:[#allocation6 + $0x38] sm:$0xff]
    %v359 = vld [vmem:[#allocation6 + $0x40] sm:$0xff]
    %v360 = vld [vmem:[#allocation6 + $0x48] sm:$0xff]
    %v361 = vld [vmem:[#allocation6 + $0x50] sm:$0xff]
    %v362 = vld [vmem:[#allocation6 + $0x58] sm:$0xff]
    %v363 = vld [vmem:[#allocation6 + $0x60] sm:$0xff]
    %v364 = vld [vmem:[#allocation6 + $0x68] sm:$0xff]
    %v365 = vld [vmem:[#allocation6 + $0x70] sm:$0xff]
    %v366 = vld [vmem:[#allocation6 + $0x78] sm:$0xff]
    %v367 = vld [vmem:[#allocation6 + $0x80] sm:$0xff]
    %v368 = vld [vmem:[#allocation6 + $0x88] sm:$0xff]
    %v369 = vld [vmem:[#allocation6 + $0x90] sm:$0xff]
    %v370 = vld [vmem:[#allocation6 + $0x98] sm:$0xff]
    %v371 = vld [vmem:[#allocation6 + $0xa0] sm:$0xff]
    %v372 = vld [vmem:[#allocation6 + $0xa8] sm:$0xff]
    %v373 = vld [vmem:[#allocation6 + $0xb0] sm:$0xff]
    %v374 = vld [vmem:[#allocation6 + $0xb8] sm:$0xff]
    %v375 = vld [vmem:[#allocation6 + $0xc0] sm:$0xff]
    %v376 = vld [vmem:[#allocation6 + $0xc8] sm:$0xff]
    %v377 = vld [vmem:[#allocation6 + $0xd0] sm:$0xff]
    %v378 = vld [vmem:[#allocation6 + $0xd8] sm:$0xff]
    %v379 = vld [vmem:[#allocation6 + $0xe0] sm:$0xff]
    %v380 = vld [vmem:[#allocation6 + $0xe8] sm:$0xff]
    %v381 = vld [vmem:[#allocation6 + $0xf0] sm:$0xff]
    %v382 = vld [vmem:[#allocation6 + $0xf8] sm:$0xff]
    %v383 = vld [vmem:[#allocation6 + $0x100] sm:$0xff]
    %v384 = vld [vmem:[#allocation6 + $0x108] sm:$0xff]
    %v385 = vld [vmem:[#allocation6 + $0x110] sm:$0xff]
    %v386 = vld [vmem:[#allocation6 + $0x118] sm:$0xff]
    %v387 = vld [vmem:[#allocation6 + $0x120] sm:$0xff]
    %v388 = vld [vmem:[#allocation6 + $0x128] sm:$0xff]
    %v389 = vld [vmem:[#allocation6 + $0x130] sm:$0xff]
    %v390 = vld [vmem:[#allocation6 + $0x138] sm:$0xff]
    %v391 = vld [vmem:[#allocation6 + $0x140] sm:$0xff]
    %v392 = vld [vmem:[#allocation6 + $0x148] sm:$0xff]
    %v393 = vld [vmem:[#allocation6 + $0x150] sm:$0xff]
    %v394 = vld [vmem:[#allocation6 + $0x158] sm:$0xff]
    %v395 = vld [vmem:[#allocation6 + $0x160] sm:$0xff]
    %v396 = vld [vmem:[#allocation6 + $0x168] sm:$0xff]
    %v397 = vld [vmem:[#allocation6 + $0x170] sm:$0xff]
    %v398 = vld [vmem:[#allocation6 + $0x178] sm:$0xff]
    %v399 = vld [vmem:[#allocation6 + $0x180] sm:$0xff]
    %v400 = vld [vmem:[#allocation6 + $0x188] sm:$0xff]
    %v401 = vld [vmem:[#allocation6 + $0x190] sm:$0xff]
    %v402 = vld [vmem:[#allocation6 + $0x198] sm:$0xff]
    %v403 = vld [vmem:[#allocation6 + $0x1a0] sm:$0xff]
    %v404 = vld [vmem:[#allocation6 + $0x1a8] sm:$0xff]
    %v405 = vld [vmem:[#allocation6 + $0x1b0] sm:$0xff]
    %v406 = vld [vmem:[#allocation6 + $0x1b8] sm:$0xff]
    %v407 = vld [vmem:[#allocation6 + $0x1c0] sm:$0xff]
    %v408 = vld [vmem:[#allocation6 + $0x1c8] sm:$0xff]
    %v409 = vld [vmem:[#allocation6 + $0x1d0] sm:$0xff]
    %v410 = vld [vmem:[#allocation6 + $0x1d8] sm:$0xff]
    %v411 = vld [vmem:[#allocation6 + $0x1e0] sm:$0xff]
    %v412 = vld [vmem:[#allocation6 + $0x1e8] sm:$0xff]
    %v413 = vld [vmem:[#allocation6 + $0x1f0] sm:$0xff]
    %v414 = vld [vmem:[#allocation6 + $0x1f8] sm:$0xff]
    %415 = vmatprep.subr.mxu0 %v352
    %416 = vmatpush1.msra.mxu0 %v351
    %417 = vmatprep.subr.mxu0 %v354
    %418 = vmatpush1.msra.mxu0 %v353
    %419 = vmatprep.subr.mxu0 %v356
    %420 = vmatpush1.msra.mxu0 %v355
    %421 = vmatprep.subr.mxu0 %v358
    %422 = vmatpush1.msra.mxu0 %v357
    %423 = vmatprep.subr.mxu0 %v360
    %424 = vmatpush1.msra.mxu0 %v359
    %425 = vmatprep.subr.mxu0 %v362
    %426 = vmatpush1.msra.mxu0 %v361
    %427 = vmatprep.subr.mxu0 %v364
    %428 = vmatpush1.msra.mxu0 %v363
    %429 = vmatprep.subr.mxu0 %v366
    %430 = vmatpush1.msra.mxu0 %v365
    %431 = vmatprep.subr.mxu0 %v368
    %432 = vmatpush1.msra.mxu0 %v367
    %433 = vmatprep.subr.mxu0 %v370
    %434 = vmatpush1.msra.mxu0 %v369
    %435 = vmatprep.subr.mxu0 %v372
    %436 = vmatpush1.msra.mxu0 %v371
    %437 = vmatprep.subr.mxu0 %v374
    %438 = vmatpush1.msra.mxu0 %v373
    %439 = vmatprep.subr.mxu0 %v376
    %440 = vmatpush1.msra.mxu0 %v375
    %441 = vmatprep.subr.mxu0 %v378
    %442 = vmatpush1.msra.mxu0 %v377
    %443 = vmatprep.subr.mxu0 %v380
    %444 = vmatpush1.msra.mxu0 %v379
    %445 = vmatprep.subr.mxu0 %v382
    %446 = vmatpush1.msra.mxu0 %v381
    %447 = vmatprep.subr.mxu0 %v384
    %448 = vmatpush1.msra.mxu0 %v383
    %449 = vmatprep.subr.mxu0 %v386
    %450 = vmatpush1.msra.mxu0 %v385
    %451 = vmatprep.subr.mxu0 %v388
    %452 = vmatpush1.msra.mxu0 %v387
    %453 = vmatprep.subr.mxu0 %v390
    %454 = vmatpush1.msra.mxu0 %v389
    %455 = vmatprep.subr.mxu0 %v392
    %456 = vmatpush1.msra.mxu0 %v391
    %457 = vmatprep.subr.mxu0 %v394
    %458 = vmatpush1.msra.mxu0 %v393
    %459 = vmatprep.subr.mxu0 %v396
    %460 = vmatpush1.msra.mxu0 %v395
    %461 = vmatprep.subr.mxu0 %v398
    %462 = vmatpush1.msra.mxu0 %v397
    %463 = vmatprep.subr.mxu0 %v400
    %464 = vmatpush1.msra.mxu0 %v399
    %465 = vmatprep.subr.mxu0 %v402
    %466 = vmatpush1.msra.mxu0 %v401
    %467 = vmatprep.subr.mxu0 %v404
    %468 = vmatpush1.msra.mxu0 %v403
    %469 = vmatprep.subr.mxu0 %v406
    %470 = vmatpush1.msra.mxu0 %v405
    %471 = vmatprep.subr.mxu0 %v408
    %472 = vmatpush1.msra.mxu0 %v407
    %473 = vmatprep.subr.mxu0 %v410
    %474 = vmatpush1.msra.mxu0 %v409
    %475 = vmatprep.subr.mxu0 %v412
    %476 = vmatpush1.msra.mxu0 %v411
    %477 = vmatprep.subr.mxu0 %v414
    %478 = vmatpush1.msra.mxu0 %v413
    %479 = vmatprep.mubr.f32.mxu0 %v344
    %480 = vmatmul.mubr.f32.gmra.mrb[0].mxu0 %v343
    %v481 = vpop.f32.mrb[0].mxu0
    %v482 = vadd.f32 0.0, %v481
    %v483 = vpop.f32.mrb[0].mxu0
    %v484 = vadd.f32 0.0, %v483
    %485 = vdwg.mxu0
    %v486 = vadd.f32 %v349, %v482
    %v487 = vadd.f32 %v350, %v484
    %v488 = vmul.f32 %v343, 0.9
    %v489 = vmul.f32 %v344, 0.9
    %v490 = vtanh.pop %v486
    %v491 = vtanh.pop %v487
    %v492 = vmul.f32 %v490, 0.1
    %v493 = vmul.f32 %v491, 0.1
    %v494 = vadd.f32 %v488, %v492
    %v495 = vadd.f32 %v489, %v493
    %s496 = scalar_lea.vmem [#allocation8], 32
    %497 = vst [vmem:[%s496] sm:$0xff] %v494
    %498 = vst [vmem:[%s496 + $0x8] sm:$0xff] %v495
    %s499 = scalar_lea.vmem [#allocation3], 48
    %v500 = vld [vmem:[%s499] sm:$0xff]
    %v501 = vld [vmem:[%s499 + $0x8] sm:$0xff]
    %v502 = vld [vmem:[#allocation6] sm:$0xff]
    %v503 = vld [vmem:[#allocation6 + $0x8] sm:$0xff]
    %v504 = vld [vmem:[#allocation6 + $0x10] sm:$0xff]
    %v505 = vld [vmem:[#allocation6 + $0x18] sm:$0xff]
    %v506 = vld [vmem:[#allocation6 + $0x20] sm:$0xff]
    %v507 = vld [vmem:[#allocation6 + $0x28] sm:$0xff]
    %v508 = vld [vmem:[#allocation6 + $0x30] sm:$0xff]
    %v509 = vld [vmem:[#allocation6 + $0x38] sm:$0xff]
    %v510 = vld [vmem:[#allocation6 + $0x40] sm:$0xff]
    %v511 = vld [vmem:[#allocation6 + $0x48] sm:$0xff]
    %v512 = vld [vmem:[#allocation6 + $0x50] sm:$0xff]
    %v513 = vld [vmem:[#allocation6 + $0x58] sm:$0xff]
    %v514 = vld [vmem:[#allocation6 + $0x60] sm:$0xff]
    %v515 = vld [vmem:[#allocation6 + $0x68] sm:$0xff]
    %v516 = vld [vmem:[#allocation6 + $0x70] sm:$0xff]
    %v517 = vld [vmem:[#allocation6 + $0x78] sm:$0xff]
    %v518 = vld [vmem:[#allocation6 + $0x80] sm:$0xff]
    %v519 = vld [vmem:[#allocation6 + $0x88] sm:$0xff]
    %v520 = vld [vmem:[#allocation6 + $0x90] sm:$0xff]
    %v521 = vld [vmem:[#allocation6 + $0x98] sm:$0xff]
    %v522 = vld [vmem:[#allocation6 + $0xa0] sm:$0xff]
    %v523 = vld [vmem:[#allocation6 + $0xa8] sm:$0xff]
    %v524 = vld [vmem:[#allocation6 + $0xb0] sm:$0xff]
    %v525 = vld [vmem:[#allocation6 + $0xb8] sm:$0xff]
    %v526 = vld [vmem:[#allocation6 + $0xc0] sm:$0xff]
    %v527 = vld [vmem:[#allocation6 + $0xc8] sm:$0xff]
    %v528 = vld [vmem:[#allocation6 + $0xd0] sm:$0xff]
    %v529 = vld [vmem:[#allocation6 + $0xd8] sm:$0xff]
    %v530 = vld [vmem:[#allocation6 + $0xe0] sm:$0xff]
    %v531 = vld [vmem:[#allocation6 + $0xe8] sm:$0xff]
    %v532 = vld [vmem:[#allocation6 + $0xf0] sm:$0xff]
    %v533 = vld [vmem:[#allocation6 + $0xf8] sm:$0xff]
    %v534 = vld [vmem:[#allocation6 + $0x100] sm:$0xff]
    %v535 = vld [vmem:[#allocation6 + $0x108] sm:$0xff]
    %v536 = vld [vmem:[#allocation6 + $0x110] sm:$0xff]
    %v537 = vld [vmem:[#allocation6 + $0x118] sm:$0xff]
    %v538 = vld [vmem:[#allocation6 + $0x120] sm:$0xff]
    %v539 = vld [vmem:[#allocation6 + $0x128] sm:$0xff]
    %v540 = vld [vmem:[#allocation6 + $0x130] sm:$0xff]
    %v541 = vld [vmem:[#allocation6 + $0x138] sm:$0xff]
    %v542 = vld [vmem:[#allocation6 + $0x140] sm:$0xff]
    %v543 = vld [vmem:[#allocation6 + $0x148] sm:$0xff]
    %v544 = vld [vmem:[#allocation6 + $0x150] sm:$0xff]
    %v545 = vld [vmem:[#allocation6 + $0x158] sm:$0xff]
    %v546 = vld [vmem:[#allocation6 + $0x160] sm:$0xff]
    %v547 = vld [vmem:[#allocation6 + $0x168] sm:$0xff]
    %v548 = vld [vmem:[#allocation6 + $0x170] sm:$0xff]
    %v549 = vld [vmem:[#allocation6 + $0x178] sm:$0xff]
    %v550 = vld [vmem:[#allocation6 + $0x180] sm:$0xff]
    %v551 = vld [vmem:[#allocation6 + $0x188] sm:$0xff]
    %v552 = vld [vmem:[#allocation6 + $0x190] sm:$0xff]
    %v553 = vld [vmem:[#allocation6 + $0x198] sm:$0xff]
    %v554 = vld [vmem:[#allocation6 + $0x1a0] sm:$0xff]
    %v555 = vld [vmem:[#allocation6 + $0x1a8] sm:$0xff]
    %v556 = vld [vmem:[#allocation6 + $0x1b0] sm:$0xff]
    %v557 = vld [vmem:[#allocation6 + $0x1b8] sm:$0xff]
    %v558 = vld [vmem:[#allocation6 + $0x1c0] sm:$0xff]
    %v559 = vld [vmem:[#allocation6 + $0x1c8] sm:$0xff]
    %v560 = vld [vmem:[#allocation6 + $0x1d0] sm:$0xff]
    %v561 = vld [vmem:[#allocation6 + $0x1d8] sm:$0xff]
    %v562 = vld [vmem:[#allocation6 + $0x1e0] sm:$0xff]
    %v563 = vld [vmem:[#allocation6 + $0x1e8] sm:$0xff]
    %v564 = vld [vmem:[#allocation6 + $0x1f0] sm:$0xff]
    %v565 = vld [vmem:[#allocation6 + $0x1f8] sm:$0xff]
    %566 = vmatprep.subr.mxu0 %v503
    %567 = vmatpush1.msra.mxu0 %v502
    %568 = vmatprep.subr.mxu0 %v505
    %569 = vmatpush1.msra.mxu0 %v504
    %570 = vmatprep.subr.mxu0 %v507
    %571 = vmatpush1.msra.mxu0 %v506
    %572 = vmatprep.subr.mxu0 %v509
    %573 = vmatpush1.msra.mxu0 %v508
    %574 = vmatprep.subr.mxu0 %v511
    %575 = vmatpush1.msra.mxu0 %v510
    %576 = vmatprep.subr.mxu0 %v513
    %577 = vmatpush1.msra.mxu0 %v512
    %578 = vmatprep.subr.mxu0 %v515
    %579 = vmatpush1.msra.mxu0 %v514
    %580 = vmatprep.subr.mxu0 %v517
    %581 = vmatpush1.msra.mxu0 %v516
    %582 = vmatprep.subr.mxu0 %v519
    %583 = vmatpush1.msra.mxu0 %v518
    %584 = vmatprep.subr.mxu0 %v521
    %585 = vmatpush1.msra.mxu0 %v520
    %586 = vmatprep.subr.mxu0 %v523
    %587 = vmatpush1.msra.mxu0 %v522
    %588 = vmatprep.subr.mxu0 %v525
    %589 = vmatpush1.msra.mxu0 %v524
    %590 = vmatprep.subr.mxu0 %v527
    %591 = vmatpush1.msra.mxu0 %v526
    %592 = vmatprep.subr.mxu0 %v529
    %593 = vmatpush1.msra.mxu0 %v528
    %594 = vmatprep.subr.mxu0 %v531
    %595 = vmatpush1.msra.mxu0 %v530
    %596 = vmatprep.subr.mxu0 %v533
    %597 = vmatpush1.msra.mxu0 %v532
    %598 = vmatprep.subr.mxu0 %v535
    %599 = vmatpush1.msra.mxu0 %v534
    %600 = vmatprep.subr.mxu0 %v537
    %601 = vmatpush1.msra.mxu0 %v536
    %602 = vmatprep.subr.mxu0 %v539
    %603 = vmatpush1.msra.mxu0 %v538
    %604 = vmatprep.subr.mxu0 %v541
    %605 = vmatpush1.msra.mxu0 %v540
    %606 = vmatprep.subr.mxu0 %v543
    %607 = vmatpush1.msra.mxu0 %v542
    %608 = vmatprep.subr.mxu0 %v545
    %609 = vmatpush1.msra.mxu0 %v544
    %610 = vmatprep.subr.mxu0 %v547
    %611 = vmatpush1.msra.mxu0 %v546
    %612 = vmatprep.subr.mxu0 %v549
    %613 = vmatpush1.msra.mxu0 %v548
    %614 = vmatprep.subr.mxu0 %v551
    %615 = vmatpush1.msra.mxu0 %v550
    %616 = vmatprep.subr.mxu0 %v553
    %617 = vmatpush1.msra.mxu0 %v552
    %618 = vmatprep.subr.mxu0 %v555
    %619 = vmatpush1.msra.mxu0 %v554
    %620 = vmatprep.subr.mxu0 %v557
    %621 = vmatpush1.msra.mxu0 %v556
    %622 = vmatprep.subr.mxu0 %v559
    %623 = vmatpush1.msra.mxu0 %v558
    %624 = vmatprep.subr.mxu0 %v561
    %625 = vmatpush1.msra.mxu0 %v560
    %626 = vmatprep.subr.mxu0 %v563
    %627 = vmatpush1.msra.mxu0 %v562
    %628 = vmatprep.subr.mxu0 %v565
    %629 = vmatpush1.msra.mxu0 %v564
    %630 = vmatprep.mubr.f32.mxu0 %v495
    %631 = vmatmul.mubr.f32.gmra.mrb[0].mxu0 %v494
    %v632 = vpop.f32.mrb[0].mxu0
    %v633 = vadd.f32 0.0, %v632
    %v634 = vpop.f32.mrb[0].mxu0
    %v635 = vadd.f32 0.0, %v634
    %636 = vdwg.mxu0
    %v637 = vadd.f32 %v500, %v633
    %v638 = vadd.f32 %v501, %v635
    %v639 = vmul.f32 %v494, 0.9
    %v640 = vmul.f32 %v495, 0.9
    %v641 = vtanh.pop %v637
    %v642 = vtanh.pop %v638
    %v643 = vmul.f32 %v641, 0.1
    %v644 = vmul.f32 %v642, 0.1
    %v645 = vadd.f32 %v639, %v643
    %v646 = vadd.f32 %v640, %v644
    %s647 = scalar_lea.vmem [#allocation8], 48
    %648 = vst [vmem:[%s647] sm:$0xff] %v645
    %649 = vst [vmem:[%s647 + $0x8] sm:$0xff] %v646
    %s650 = scalar_lea.vmem [#allocation3], 64
    %v651 = vld [vmem:[%s650] sm:$0xff]
    %v652 = vld [vmem:[%s650 + $0x8] sm:$0xff]
    %v653 = vld [vmem:[#allocation6] sm:$0xff]
    %v654 = vld [vmem:[#allocation6 + $0x8] sm:$0xff]
    %v655 = vld [vmem:[#allocation6 + $0x10] sm:$0xff]
    %v656 = vld [vmem:[#allocation6 + $0x18] sm:$0xff]
    %v657 = vld [vmem:[#allocation6 + $0x20] sm:$0xff]
    %v658 = vld [vmem:[#allocation6 + $0x28] sm:$0xff]
    %v659 = vld [vmem:[#allocation6 + $0x30] sm:$0xff]
    %v660 = vld [vmem:[#allocation6 + $0x38] sm:$0xff]
    %v661 = vld [vmem:[#allocation6 + $0x40] sm:$0xff]
    %v662 = vld [vmem:[#allocation6 + $0x48] sm:$0xff]
    %v663 = vld [vmem:[#allocation6 + $0x50] sm:$0xff]
    %v664 = vld [vmem:[#allocation6 + $0x58] sm:$0xff]
    %v665 = vld [vmem:[#allocation6 + $0x60] sm:$0xff]
    %v666 = vld [vmem:[#allocation6 + $0x68] sm:$0xff]
    %v667 = vld [vmem:[#allocation6 + $0x70] sm:$0xff]
    %v668 = vld [vmem:[#allocation6 + $0x78] sm:$0xff]
    %v669 = vld [vmem:[#allocation6 + $0x80] sm:$0xff]
    %v670 = vld [vmem:[#allocation6 + $0x88] sm:$0xff]
    %v671 = vld [vmem:[#allocation6 + $0x90] sm:$0xff]
    %v672 = vld [vmem:[#allocation6 + $0x98] sm:$0xff]
    %v673 = vld [vmem:[#allocation6 + $0xa0] sm:$0xff]
    %v674 = vld [vmem:[#allocation6 + $0xa8] sm:$0xff]
    %v675 = vld [vmem:[#allocation6 + $0xb0] sm:$0xff]
    %v676 = vld [vmem:[#allocation6 + $0xb8] sm:$0xff]
    %v677 = vld [vmem:[#allocation6 + $0xc0] sm:$0xff]
    %v678 = vld [vmem:[#allocation6 + $0xc8] sm:$0xff]
    %v679 = vld [vmem:[#allocation6 + $0xd0] sm:$0xff]
    %v680 = vld [vmem:[#allocation6 + $0xd8] sm:$0xff]
    %v681 = vld [vmem:[#allocation6 + $0xe0] sm:$0xff]
    %v682 = vld [vmem:[#allocation6 + $0xe8] sm:$0xff]
    %v683 = vld [vmem:[#allocation6 + $0xf0] sm:$0xff]
    %v684 = vld [vmem:[#allocation6 + $0xf8] sm:$0xff]
    %v685 = vld [vmem:[#allocation6 + $0x100] sm:$0xff]
    %v686 = vld [vmem:[#allocation6 + $0x108] sm:$0xff]
    %v687 = vld [vmem:[#allocation6 + $0x110] sm:$0xff]
    %v688 = vld [vmem:[#allocation6 + $0x118] sm:$0xff]
    %v689 = vld [vmem:[#allocation6 + $0x120] sm:$0xff]
    %v690 = vld [vmem:[#allocation6 + $0x128] sm:$0xff]
    %v691 = vld [vmem:[#allocation6 + $0x130] sm:$0xff]
    %v692 = vld [vmem:[#allocation6 + $0x138] sm:$0xff]
    %v693 = vld [vmem:[#allocation6 + $0x140] sm:$0xff]
    %v694 = vld [vmem:[#allocation6 + $0x148] sm:$0xff]
    %v695 = vld [vmem:[#allocation6 + $0x150] sm:$0xff]
    %v696 = vld [vmem:[#allocation6 + $0x158] sm:$0xff]
    %v697 = vld [vmem:[#allocation6 + $0x160] sm:$0xff]
    %v698 = vld [vmem:[#allocation6 + $0x168] sm:$0xff]
    %v699 = vld [vmem:[#allocation6 + $0x170] sm:$0xff]
    %v700 = vld [vmem:[#allocation6 + $0x178] sm:$0xff]
    %v701 = vld [vmem:[#allocation6 + $0x180] sm:$0xff]
    %v702 = vld [vmem:[#allocation6 + $0x188] sm:$0xff]
    %v703 = vld [vmem:[#allocation6 + $0x190] sm:$0xff]
    %v704 = vld [vmem:[#allocation6 + $0x198] sm:$0xff]
    %v705 = vld [vmem:[#allocation6 + $0x1a0] sm:$0xff]
    %v706 = vld [vmem:[#allocation6 + $0x1a8] sm:$0xff]
    %v707 = vld [vmem:[#allocation6 + $0x1b0] sm:$0xff]
    %v708 = vld [vmem:[#allocation6 + $0x1b8] sm:$0xff]
    %v709 = vld [vmem:[#allocation6 + $0x1c0] sm:$0xff]
    %v710 = vld [vmem:[#allocation6 + $0x1c8] sm:$0xff]
    %v711 = vld [vmem:[#allocation6 + $0x1d0] sm:$0xff]
    %v712 = vld [vmem:[#allocation6 + $0x1d8] sm:$0xff]
    %v713 = vld [vmem:[#allocation6 + $0x1e0] sm:$0xff]
    %v714 = vld [vmem:[#allocation6 + $0x1e8] sm:$0xff]
    %v715 = vld [vmem:[#allocation6 + $0x1f0] sm:$0xff]
    %v716 = vld [vmem:[#allocation6 + $0x1f8] sm:$0xff]
    %717 = vmatprep.subr.mxu0 %v654
    %718 = vmatpush1.msra.mxu0 %v653
    %719 = vmatprep.subr.mxu0 %v656
    %720 = vmatpush1.msra.mxu0 %v655
    %721 = vmatprep.subr.mxu0 %v658
    %722 = vmatpush1.msra.mxu0 %v657
    %723 = vmatprep.subr.mxu0 %v660
    %724 = vmatpush1.msra.mxu0 %v659
    %725 = vmatprep.subr.mxu0 %v662
    %726 = vmatpush1.msra.mxu0 %v661
    %727 = vmatprep.subr.mxu0 %v664
    %728 = vmatpush1.msra.mxu0 %v663
    %729 = vmatprep.subr.mxu0 %v666
    %730 = vmatpush1.msra.mxu0 %v665
    %731 = vmatprep.subr.mxu0 %v668
    %732 = vmatpush1.msra.mxu0 %v667
    %733 = vmatprep.subr.mxu0 %v670
    %734 = vmatpush1.msra.mxu0 %v669
    %735 = vmatprep.subr.mxu0 %v672
    %736 = vmatpush1.msra.mxu0 %v671
    %737 = vmatprep.subr.mxu0 %v674
    %738 = vmatpush1.msra.mxu0 %v673
    %739 = vmatprep.subr.mxu0 %v676
    %740 = vmatpush1.msra.mxu0 %v675
    %741 = vmatprep.subr.mxu0 %v678
    %742 = vmatpush1.msra.mxu0 %v677
    %743 = vmatprep.subr.mxu0 %v680
    %744 = vmatpush1.msra.mxu0 %v679
    %745 = vmatprep.subr.mxu0 %v682
    %746 = vmatpush1.msra.mxu0 %v681
    %747 = vmatprep.subr.mxu0 %v684
    %748 = vmatpush1.msra.mxu0 %v683
    %749 = vmatprep.subr.mxu0 %v686
    %750 = vmatpush1.msra.mxu0 %v685
    %751 = vmatprep.subr.mxu0 %v688
    %752 = vmatpush1.msra.mxu0 %v687
    %753 = vmatprep.subr.mxu0 %v690
    %754 = vmatpush1.msra.mxu0 %v689
    %755 = vmatprep.subr.mxu0 %v692
    %756 = vmatpush1.msra.mxu0 %v691
    %757 = vmatprep.subr.mxu0 %v694
    %758 = vmatpush1.msra.mxu0 %v693
    %759 = vmatprep.subr.mxu0 %v696
    %760 = vmatpush1.msra.mxu0 %v695
    %761 = vmatprep.subr.mxu0 %v698
    %762 = vmatpush1.msra.mxu0 %v697
    %763 = vmatprep.subr.mxu0 %v700
    %764 = vmatpush1.msra.mxu0 %v699
    %765 = vmatprep.subr.mxu0 %v702
    %766 = vmatpush1.msra.mxu0 %v701
    %767 = vmatprep.subr.mxu0 %v704
    %768 = vmatpush1.msra.mxu0 %v703
    %769 = vmatprep.subr.mxu0 %v706
    %770 = vmatpush1.msra.mxu0 %v705
    %771 = vmatprep.subr.mxu0 %v708
    %772 = vmatpush1.msra.mxu0 %v707
    %773 = vmatprep.subr.mxu0 %v710
    %774 = vmatpush1.msra.mxu0 %v709
    %775 = vmatprep.subr.mxu0 %v712
    %776 = vmatpush1.msra.mxu0 %v711
    %777 = vmatprep.subr.mxu0 %v714
    %778 = vmatpush1.msra.mxu0 %v713
    %779 = vmatprep.subr.mxu0 %v716
    %780 = vmatpush1.msra.mxu0 %v715
    %781 = vmatprep.mubr.f32.mxu0 %v646
    %782 = vmatmul.mubr.f32.gmra.mrb[0].mxu0 %v645
    %v783 = vpop.f32.mrb[0].mxu0
    %v784 = vadd.f32 0.0, %v783
    %v785 = vpop.f32.mrb[0].mxu0
    %v786 = vadd.f32 0.0, %v785
    %787 = vdwg.mxu0
    %v788 = vadd.f32 %v651, %v784
    %v789 = vadd.f32 %v652, %v786
    %v790 = vmul.f32 %v645, 0.9
    %v791 = vmul.f32 %v646, 0.9
    %v792 = vtanh.pop %v788
    %v793 = vtanh.pop %v789
    %v794 = vmul.f32 %v792, 0.1
    %v795 = vmul.f32 %v793, 0.1
    %v796 = vadd.f32 %v790, %v794
    %v797 = vadd.f32 %v791, %v795
    %s798 = scalar_lea.vmem [#allocation8], 64
    %799 = vst [vmem:[%s798] sm:$0xff] %v796
    %800 = vst [vmem:[%s798 + $0x8] sm:$0xff] %v797
    %s801 = scalar_lea.vmem [#allocation3], 80
    %v802 = vld [vmem:[%s801] sm:$0xff]
    %v803 = vld [vmem:[%s801 + $0x8] sm:$0xff]
    %v804 = vld [vmem:[#allocation6] sm:$0xff]
    %v805 = vld [vmem:[#allocation6 + $0x8] sm:$0xff]
    %v806 = vld [vmem:[#allocation6 + $0x10] sm:$0xff]
    %v807 = vld [vmem:[#allocation6 + $0x18] sm:$0xff]
    %v808 = vld [vmem:[#allocation6 + $0x20] sm:$0xff]
    %v809 = vld [vmem:[#allocation6 + $0x28] sm:$0xff]
    %v810 = vld [vmem:[#allocation6 + $0x30] sm:$0xff]
    %v811 = vld [vmem:[#allocation6 + $0x38] sm:$0xff]
    %v812 = vld [vmem:[#allocation6 + $0x40] sm:$0xff]
    %v813 = vld [vmem:[#allocation6 + $0x48] sm:$0xff]
    %v814 = vld [vmem:[#allocation6 + $0x50] sm:$0xff]
    %v815 = vld [vmem:[#allocation6 + $0x58] sm:$0xff]
    %v816 = vld [vmem:[#allocation6 + $0x60] sm:$0xff]
    %v817 = vld [vmem:[#allocation6 + $0x68] sm:$0xff]
    %v818 = vld [vmem:[#allocation6 + $0x70] sm:$0xff]
    %v819 = vld [vmem:[#allocation6 + $0x78] sm:$0xff]
    %v820 = vld [vmem:[#allocation6 + $0x80] sm:$0xff]
    %v821 = vld [vmem:[#allocation6 + $0x88] sm:$0xff]
    %v822 = vld [vmem:[#allocation6 + $0x90] sm:$0xff]
    %v823 = vld [vmem:[#allocation6 + $0x98] sm:$0xff]
    %v824 = vld [vmem:[#allocation6 + $0xa0] sm:$0xff]
    %v825 = vld [vmem:[#allocation6 + $0xa8] sm:$0xff]
    %v826 = vld [vmem:[#allocation6 + $0xb0] sm:$0xff]
    %v827 = vld [vmem:[#allocation6 + $0xb8] sm:$0xff]
    %v828 = vld [vmem:[#allocation6 + $0xc0] sm:$0xff]
    %v829 = vld [vmem:[#allocation6 + $0xc8] sm:$0xff]
    %v830 = vld [vmem:[#allocation6 + $0xd0] sm:$0xff]
    %v831 = vld [vmem:[#allocation6 + $0xd8] sm:$0xff]
    %v832 = vld [vmem:[#allocation6 + $0xe0] sm:$0xff]
    %v833 = vld [vmem:[#allocation6 + $0xe8] sm:$0xff]
    %v834 = vld [vmem:[#allocation6 + $0xf0] sm:$0xff]
    %v835 = vld [vmem:[#allocation6 + $0xf8] sm:$0xff]
    %v836 = vld [vmem:[#allocation6 + $0x100] sm:$0xff]
    %v837 = vld [vmem:[#allocation6 + $0x108] sm:$0xff]
    %v838 = vld [vmem:[#allocation6 + $0x110] sm:$0xff]
    %v839 = vld [vmem:[#allocation6 + $0x118] sm:$0xff]
    %v840 = vld [vmem:[#allocation6 + $0x120] sm:$0xff]
    %v841 = vld [vmem:[#allocation6 + $0x128] sm:$0xff]
    %v842 = vld [vmem:[#allocation6 + $0x130] sm:$0xff]
    %v843 = vld [vmem:[#allocation6 + $0x138] sm:$0xff]
    %v844 = vld [vmem:[#allocation6 + $0x140] sm:$0xff]
    %v845 = vld [vmem:[#allocation6 + $0x148] sm:$0xff]
    %v846 = vld [vmem:[#allocation6 + $0x150] sm:$0xff]
    %v847 = vld [vmem:[#allocation6 + $0x158] sm:$0xff]
    %v848 = vld [vmem:[#allocation6 + $0x160] sm:$0xff]
    %v849 = vld [vmem:[#allocation6 + $0x168] sm:$0xff]
    %v850 = vld [vmem:[#allocation6 + $0x170] sm:$0xff]
    %v851 = vld [vmem:[#allocation6 + $0x178] sm:$0xff]
    %v852 = vld [vmem:[#allocation6 + $0x180] sm:$0xff]
    %v853 = vld [vmem:[#allocation6 + $0x188] sm:$0xff]
    %v854 = vld [vmem:[#allocation6 + $0x190] sm:$0xff]
    %v855 = vld [vmem:[#allocation6 + $0x198] sm:$0xff]
    %v856 = vld [vmem:[#allocation6 + $0x1a0] sm:$0xff]
    %v857 = vld [vmem:[#allocation6 + $0x1a8] sm:$0xff]
    %v858 = vld [vmem:[#allocation6 + $0x1b0] sm:$0xff]
    %v859 = vld [vmem:[#allocation6 + $0x1b8] sm:$0xff]
    %v860 = vld [vmem:[#allocation6 + $0x1c0] sm:$0xff]
    %v861 = vld [vmem:[#allocation6 + $0x1c8] sm:$0xff]
    %v862 = vld [vmem:[#allocation6 + $0x1d0] sm:$0xff]
    %v863 = vld [vmem:[#allocation6 + $0x1d8] sm:$0xff]
    %v864 = vld [vmem:[#allocation6 + $0x1e0] sm:$0xff]
    %v865 = vld [vmem:[#allocation6 + $0x1e8] sm:$0xff]
    %v866 = vld [vmem:[#allocation6 + $0x1f0] sm:$0xff]
    %v867 = vld [vmem:[#allocation6 + $0x1f8] sm:$0xff]
    %868 = vmatprep.subr.mxu0 %v805
    %869 = vmatpush1.msra.mxu0 %v804
    %870 = vmatprep.subr.mxu0 %v807
    %871 = vmatpush1.msra.mxu0 %v806
    %872 = vmatprep.subr.mxu0 %v809
    %873 = vmatpush1.msra.mxu0 %v808
    %874 = vmatprep.subr.mxu0 %v811
    %875 = vmatpush1.msra.mxu0 %v810
    %876 = vmatprep.subr.mxu0 %v813
    %877 = vmatpush1.msra.mxu0 %v812
    %878 = vmatprep.subr.mxu0 %v815
    %879 = vmatpush1.msra.mxu0 %v814
    %880 = vmatprep.subr.mxu0 %v817
    %881 = vmatpush1.msra.mxu0 %v816
    %882 = vmatprep.subr.mxu0 %v819
    %883 = vmatpush1.msra.mxu0 %v818
    %884 = vmatprep.subr.mxu0 %v821
    %885 = vmatpush1.msra.mxu0 %v820
    %886 = vmatprep.subr.mxu0 %v823
    %887 = vmatpush1.msra.mxu0 %v822
    %888 = vmatprep.subr.mxu0 %v825
    %889 = vmatpush1.msra.mxu0 %v824
    %890 = vmatprep.subr.mxu0 %v827
    %891 = vmatpush1.msra.mxu0 %v826
    %892 = vmatprep.subr.mxu0 %v829
    %893 = vmatpush1.msra.mxu0 %v828
    %894 = vmatprep.subr.mxu0 %v831
    %895 = vmatpush1.msra.mxu0 %v830
    %896 = vmatprep.subr.mxu0 %v833
    %897 = vmatpush1.msra.mxu0 %v832
    %898 = vmatprep.subr.mxu0 %v835
    %899 = vmatpush1.msra.mxu0 %v834
    %900 = vmatprep.subr.mxu0 %v837
    %901 = vmatpush1.msra.mxu0 %v836
    %902 = vmatprep.subr.mxu0 %v839
    %903 = vmatpush1.msra.mxu0 %v838
    %904 = vmatprep.subr.mxu0 %v841
    %905 = vmatpush1.msra.mxu0 %v840
    %906 = vmatprep.subr.mxu0 %v843
    %907 = vmatpush1.msra.mxu0 %v842
    %908 = vmatprep.subr.mxu0 %v845
    %909 = vmatpush1.msra.mxu0 %v844
    %910 = vmatprep.subr.mxu0 %v847
    %911 = vmatpush1.msra.mxu0 %v846
    %912 = vmatprep.subr.mxu0 %v849
    %913 = vmatpush1.msra.mxu0 %v848
    %914 = vmatprep.subr.mxu0 %v851
    %915 = vmatpush1.msra.mxu0 %v850
    %916 = vmatprep.subr.mxu0 %v853
    %917 = vmatpush1.msra.mxu0 %v852
    %918 = vmatprep.subr.mxu0 %v855
    %919 = vmatpush1.msra.mxu0 %v854
    %920 = vmatprep.subr.mxu0 %v857
    %921 = vmatpush1.msra.mxu0 %v856
    %922 = vmatprep.subr.mxu0 %v859
    %923 = vmatpush1.msra.mxu0 %v858
    %924 = vmatprep.subr.mxu0 %v861
    %925 = vmatpush1.msra.mxu0 %v860
    %926 = vmatprep.subr.mxu0 %v863
    %927 = vmatpush1.msra.mxu0 %v862
    %928 = vmatprep.subr.mxu0 %v865
    %929 = vmatpush1.msra.mxu0 %v864
    %930 = vmatprep.subr.mxu0 %v867
    %931 = vmatpush1.msra.mxu0 %v866
    %932 = vmatprep.mubr.f32.mxu0 %v797
    %933 = vmatmul.mubr.f32.gmra.mrb[0].mxu0 %v796
    %v934 = vpop.f32.mrb[0].mxu0
    %v935 = vadd.f32 0.0, %v934
    %v936 = vpop.f32.mrb[0].mxu0
    %v937 = vadd.f32 0.0, %v936
    %938 = vdwg.mxu0
    %v939 = vadd.f32 %v802, %v935
    %v940 = vadd.f32 %v803, %v937
    %v941 = vmul.f32 %v796, 0.9
    %v942 = vmul.f32 %v797, 0.9
    %v943 = vtanh.pop %v939
    %v944 = vtanh.pop %v940
    %v945 = vmul.f32 %v943, 0.1
    %v946 = vmul.f32 %v944, 0.1
    %v947 = vadd.f32 %v941, %v945
    %v948 = vadd.f32 %v942, %v946
    %s949 = scalar_lea.vmem [#allocation8], 80
    %950 = vst [vmem:[%s949] sm:$0xff] %v947
    %951 = vst [vmem:[%s949 + $0x8] sm:$0xff] %v948
    %s952 = scalar_lea.vmem [#allocation3], 96
    %v953 = vld [vmem:[%s952] sm:$0xff]
    %v954 = vld [vmem:[%s952 + $0x8] sm:$0xff]
    %v955 = vld [vmem:[#allocation6] sm:$0xff]
    %v956 = vld [vmem:[#allocation6 + $0x8] sm:$0xff]
    %v957 = vld [vmem:[#allocation6 + $0x10] sm:$0xff]
    %v958 = vld [vmem:[#allocation6 + $0x18] sm:$0xff]
    %v959 = vld [vmem:[#allocation6 + $0x20] sm:$0xff]
    %v960 = vld [vmem:[#allocation6 + $0x28] sm:$0xff]
    %v961 = vld [vmem:[#allocation6 + $0x30] sm:$0xff]
    %v962 = vld [vmem:[#allocation6 + $0x38] sm:$0xff]
    %v963 = vld [vmem:[#allocation6 + $0x40] sm:$0xff]
    %v964 = vld [vmem:[#allocation6 + $0x48] sm:$0xff]
    %v965 = vld [vmem:[#allocation6 + $0x50] sm:$0xff]
    %v966 = vld [vmem:[#allocation6 + $0x58] sm:$0xff]
    %v967 = vld [vmem:[#allocation6 + $0x60] sm:$0xff]
    %v968 = vld [vmem:[#allocation6 + $0x68] sm:$0xff]
    %v969 = vld [vmem:[#allocation6 + $0x70] sm:$0xff]
    %v970 = vld [vmem:[#allocation6 + $0x78] sm:$0xff]
    %v971 = vld [vmem:[#allocation6 + $0x80] sm:$0xff]
    %v972 = vld [vmem:[#allocation6 + $0x88] sm:$0xff]
    %v973 = vld [vmem:[#allocation6 + $0x90] sm:$0xff]
    %v974 = vld [vmem:[#allocation6 + $0x98] sm:$0xff]
    %v975 = vld [vmem:[#allocation6 + $0xa0] sm:$0xff]
    %v976 = vld [vmem:[#allocation6 + $0xa8] sm:$0xff]
    %v977 = vld [vmem:[#allocation6 + $0xb0] sm:$0xff]
    %v978 = vld [vmem:[#allocation6 + $0xb8] sm:$0xff]
    %v979 = vld [vmem:[#allocation6 + $0xc0] sm:$0xff]
    %v980 = vld [vmem:[#allocation6 + $0xc8] sm:$0xff]
    %v981 = vld [vmem:[#allocation6 + $0xd0] sm:$0xff]
    %v982 = vld [vmem:[#allocation6 + $0xd8] sm:$0xff]
    %v983 = vld [vmem:[#allocation6 + $0xe0] sm:$0xff]
    %v984 = vld [vmem:[#allocation6 + $0xe8] sm:$0xff]
    %v985 = vld [vmem:[#allocation6 + $0xf0] sm:$0xff]
    %v986 = vld [vmem:[#allocation6 + $0xf8] sm:$0xff]
    %v987 = vld [vmem:[#allocation6 + $0x100] sm:$0xff]
    %v988 = vld [vmem:[#allocation6 + $0x108] sm:$0xff]
    %v989 = vld [vmem:[#allocation6 + $0x110] sm:$0xff]
    %v990 = vld [vmem:[#allocation6 + $0x118] sm:$0xff]
    %v991 = vld [vmem:[#allocation6 + $0x120] sm:$0xff]
    %v992 = vld [vmem:[#allocation6 + $0x128] sm:$0xff]
    %v993 = vld [vmem:[#allocation6 + $0x130] sm:$0xff]
    %v994 = vld [vmem:[#allocation6 + $0x138] sm:$0xff]
    %v995 = vld [vmem:[#allocation6 + $0x140] sm:$0xff]
    %v996 = vld [vmem:[#allocation6 + $0x148] sm:$0xff]
    %v997 = vld [vmem:[#allocation6 + $0x150] sm:$0xff]
    %v998 = vld [vmem:[#allocation6 + $0x158] sm:$0xff]
    %v999 = vld [vmem:[#allocation6 + $0x160] sm:$0xff]
    %v1000 = vld [vmem:[#allocation6 + $0x168] sm:$0xff]
    %v1001 = vld [vmem:[#allocation6 + $0x170] sm:$0xff]
    %v1002 = vld [vmem:[#allocation6 + $0x178] sm:$0xff]
    %v1003 = vld [vmem:[#allocation6 + $0x180] sm:$0xff]
    %v1004 = vld [vmem:[#allocation6 + $0x188] sm:$0xff]
    %v1005 = vld [vmem:[#allocation6 + $0x190] sm:$0xff]
    %v1006 = vld [vmem:[#allocation6 + $0x198] sm:$0xff]
    %v1007 = vld [vmem:[#allocation6 + $0x1a0] sm:$0xff]
    %v1008 = vld [vmem:[#allocation6 + $0x1a8] sm:$0xff]
    %v1009 = vld [vmem:[#allocation6 + $0x1b0] sm:$0xff]
    %v1010 = vld [vmem:[#allocation6 + $0x1b8] sm:$0xff]
    %v1011 = vld [vmem:[#allocation6 + $0x1c0] sm:$0xff]
    %v1012 = vld [vmem:[#allocation6 + $0x1c8] sm:$0xff]
    %v1013 = vld [vmem:[#allocation6 + $0x1d0] sm:$0xff]
    %v1014 = vld [vmem:[#allocation6 + $0x1d8] sm:$0xff]
    %v1015 = vld [vmem:[#allocation6 + $0x1e0] sm:$0xff]
    %v1016 = vld [vmem:[#allocation6 + $0x1e8] sm:$0xff]
    %v1017 = vld [vmem:[#allocation6 + $0x1f0] sm:$0xff]
    %v1018 = vld [vmem:[#allocation6 + $0x1f8] sm:$0xff]
    %1019 = vmatprep.subr.mxu0 %v956
    %1020 = vmatpush1.msra.mxu0 %v955
    %1021 = vmatprep.subr.mxu0 %v958
    %1022 = vmatpush1.msra.mxu0 %v957
    %1023 = vmatprep.subr.mxu0 %v960
    %1024 = vmatpush1.msra.mxu0 %v959
    %1025 = vmatprep.subr.mxu0 %v962
    %1026 = vmatpush1.msra.mxu0 %v961
    %1027 = vmatprep.subr.mxu0 %v964
    %1028 = vmatpush1.msra.mxu0 %v963
    %1029 = vmatprep.subr.mxu0 %v966
    %1030 = vmatpush1.msra.mxu0 %v965
    %1031 = vmatprep.subr.mxu0 %v968
    %1032 = vmatpush1.msra.mxu0 %v967
    %1033 = vmatprep.subr.mxu0 %v970
    %1034 = vmatpush1.msra.mxu0 %v969
    %1035 = vmatprep.subr.mxu0 %v972
    %1036 = vmatpush1.msra.mxu0 %v971
    %1037 = vmatprep.subr.mxu0 %v974
    %1038 = vmatpush1.msra.mxu0 %v973
    %1039 = vmatprep.subr.mxu0 %v976
    %1040 = vmatpush1.msra.mxu0 %v975
    %1041 = vmatprep.subr.mxu0 %v978
    %1042 = vmatpush1.msra.mxu0 %v977
    %1043 = vmatprep.subr.mxu0 %v980
    %1044 = vmatpush1.msra.mxu0 %v979
    %1045 = vmatprep.subr.mxu0 %v982
    %1046 = vmatpush1.msra.mxu0 %v981
    %1047 = vmatprep.subr.mxu0 %v984
    %1048 = vmatpush1.msra.mxu0 %v983
    %1049 = vmatprep.subr.mxu0 %v986
    %1050 = vmatpush1.msra.mxu0 %v985
    %1051 = vmatprep.subr.mxu0 %v988
    %1052 = vmatpush1.msra.mxu0 %v987
    %1053 = vmatprep.subr.mxu0 %v990
    %1054 = vmatpush1.msra.mxu0 %v989
    %1055 = vmatprep.subr.mxu0 %v992
    %1056 = vmatpush1.msra.mxu0 %v991
    %1057 = vmatprep.subr.mxu0 %v994
    %1058 = vmatpush1.msra.mxu0 %v993
    %1059 = vmatprep.subr.mxu0 %v996
    %1060 = vmatpush1.msra.mxu0 %v995
    %1061 = vmatprep.subr.mxu0 %v998
    %1062 = vmatpush1.msra.mxu0 %v997
    %1063 = vmatprep.subr.mxu0 %v1000
    %1064 = vmatpush1.msra.mxu0 %v999
    %1065 = vmatprep.subr.mxu0 %v1002
    %1066 = vmatpush1.msra.mxu0 %v1001
    %1067 = vmatprep.subr.mxu0 %v1004
    %1068 = vmatpush1.msra.mxu0 %v1003
    %1069 = vmatprep.subr.mxu0 %v1006
    %1070 = vmatpush1.msra.mxu0 %v1005
    %1071 = vmatprep.subr.mxu0 %v1008
    %1072 = vmatpush1.msra.mxu0 %v1007
    %1073 = vmatprep.subr.mxu0 %v1010
    %1074 = vmatpush1.msra.mxu0 %v1009
    %1075 = vmatprep.subr.mxu0 %v1012
    %1076 = vmatpush1.msra.mxu0 %v1011
    %1077 = vmatprep.subr.mxu0 %v1014
    %1078 = vmatpush1.msra.mxu0 %v1013
    %1079 = vmatprep.subr.mxu0 %v1016
    %1080 = vmatpush1.msra.mxu0 %v1015
    %1081 = vmatprep.subr.mxu0 %v1018
    %1082 = vmatpush1.msra.mxu0 %v1017
    %1083 = vmatprep.mubr.f32.mxu0 %v948
    %1084 = vmatmul.mubr.f32.gmra.mrb[0].mxu0 %v947
    %v1085 = vpop.f32.mrb[0].mxu0
    %v1086 = vadd.f32 0.0, %v1085
    %v1087 = vpop.f32.mrb[0].mxu0
    %v1088 = vadd.f32 0.0, %v1087
    %1089 = vdwg.mxu0
    %v1090 = vadd.f32 %v953, %v1086
    %v1091 = vadd.f32 %v954, %v1088
    %v1092 = vmul.f32 %v947, 0.9
    %v1093 = vmul.f32 %v948, 0.9
    %v1094 = vtanh.pop %v1090
    %v1095 = vtanh.pop %v1091
    %v1096 = vmul.f32 %v1094, 0.1
    %v1097 = vmul.f32 %v1095, 0.1
    %v1098 = vadd.f32 %v1092, %v1096
    %v1099 = vadd.f32 %v1093, %v1097
    %s1100 = scalar_lea.vmem [#allocation8], 96
    %1101 = vst [vmem:[%s1100] sm:$0xff] %v1098
    %1102 = vst [vmem:[%s1100 + $0x8] sm:$0xff] %v1099
    %s1103 = scalar_lea.vmem [#allocation3], 112
    %v1104 = vld [vmem:[%s1103] sm:$0xff]
    %v1105 = vld [vmem:[%s1103 + $0x8] sm:$0xff]
    %v1106 = vld [vmem:[#allocation6] sm:$0xff]
    %v1107 = vld [vmem:[#allocation6 + $0x8] sm:$0xff]
    %v1108 = vld [vmem:[#allocation6 + $0x10] sm:$0xff]
    %v1109 = vld [vmem:[#allocation6 + $0x18] sm:$0xff]
    %v1110 = vld [vmem:[#allocation6 + $0x20] sm:$0xff]
    %v1111 = vld [vmem:[#allocation6 + $0x28] sm:$0xff]
    %v1112 = vld [vmem:[#allocation6 + $0x30] sm:$0xff]
    %v1113 = vld [vmem:[#allocation6 + $0x38] sm:$0xff]
    %v1114 = vld [vmem:[#allocation6 + $0x40] sm:$0xff]
    %v1115 = vld [vmem:[#allocation6 + $0x48] sm:$0xff]
    %v1116 = vld [vmem:[#allocation6 + $0x50] sm:$0xff]
    %v1117 = vld [vmem:[#allocation6 + $0x58] sm:$0xff]
    %v1118 = vld [vmem:[#allocation6 + $0x60] sm:$0xff]
    %v1119 = vld [vmem:[#allocation6 + $0x68] sm:$0xff]
    %v1120 = vld [vmem:[#allocation6 + $0x70] sm:$0xff]
    %v1121 = vld [vmem:[#allocation6 + $0x78] sm:$0xff]
    %v1122 = vld [vmem:[#allocation6 + $0x80] sm:$0xff]
    %v1123 = vld [vmem:[#allocation6 + $0x88] sm:$0xff]
    %v1124 = vld [vmem:[#allocation6 + $0x90] sm:$0xff]
    %v1125 = vld [vmem:[#allocation6 + $0x98] sm:$0xff]
    %v1126 = vld [vmem:[#allocation6 + $0xa0] sm:$0xff]
    %v1127 = vld [vmem:[#allocation6 + $0xa8] sm:$0xff]
    %v1128 = vld [vmem:[#allocation6 + $0xb0] sm:$0xff]
    %v1129 = vld [vmem:[#allocation6 + $0xb8] sm:$0xff]
    %v1130 = vld [vmem:[#allocation6 + $0xc0] sm:$0xff]
    %v1131 = vld [vmem:[#allocation6 + $0xc8] sm:$0xff]
    %v1132 = vld [vmem:[#allocation6 + $0xd0] sm:$0xff]
    %v1133 = vld [vmem:[#allocation6 + $0xd8] sm:$0xff]
    %v1134 = vld [vmem:[#allocation6 + $0xe0] sm:$0xff]
    %v1135 = vld [vmem:[#allocation6 + $0xe8] sm:$0xff]
    %v1136 = vld [vmem:[#allocation6 + $0xf0] sm:$0xff]
    %v1137 = vld [vmem:[#allocation6 + $0xf8] sm:$0xff]
    %v1138 = vld [vmem:[#allocation6 + $0x100] sm:$0xff]
    %v1139 = vld [vmem:[#allocation6 + $0x108] sm:$0xff]
    %v1140 = vld [vmem:[#allocation6 + $0x110] sm:$0xff]
    %v1141 = vld [vmem:[#allocation6 + $0x118] sm:$0xff]
    %v1142 = vld [vmem:[#allocation6 + $0x120] sm:$0xff]
    %v1143 = vld [vmem:[#allocation6 + $0x128] sm:$0xff]
    %v1144 = vld [vmem:[#allocation6 + $0x130] sm:$0xff]
    %v1145 = vld [vmem:[#allocation6 + $0x138] sm:$0xff]
    %v1146 = vld [vmem:[#allocation6 + $0x140] sm:$0xff]
    %v1147 = vld [vmem:[#allocation6 + $0x148] sm:$0xff]
    %v1148 = vld [vmem:[#allocation6 + $0x150] sm:$0xff]
    %v1149 = vld [vmem:[#allocation6 + $0x158] sm:$0xff]
    %v1150 = vld [vmem:[#allocation6 + $0x160] sm:$0xff]
    %v1151 = vld [vmem:[#allocation6 + $0x168] sm:$0xff]
    %v1152 = vld [vmem:[#allocation6 + $0x170] sm:$0xff]
    %v1153 = vld [vmem:[#allocation6 + $0x178] sm:$0xff]
    %v1154 = vld [vmem:[#allocation6 + $0x180] sm:$0xff]
    %v1155 = vld [vmem:[#allocation6 + $0x188] sm:$0xff]
    %v1156 = vld [vmem:[#allocation6 + $0x190] sm:$0xff]
    %v1157 = vld [vmem:[#allocation6 + $0x198] sm:$0xff]
    %v1158 = vld [vmem:[#allocation6 + $0x1a0] sm:$0xff]
    %v1159 = vld [vmem:[#allocation6 + $0x1a8] sm:$0xff]
    %v1160 = vld [vmem:[#allocation6 + $0x1b0] sm:$0xff]
    %v1161 = vld [vmem:[#allocation6 + $0x1b8] sm:$0xff]
    %v1162 = vld [vmem:[#allocation6 + $0x1c0] sm:$0xff]
    %v1163 = vld [vmem:[#allocation6 + $0x1c8] sm:$0xff]
    %v1164 = vld [vmem:[#allocation6 + $0x1d0] sm:$0xff]
    %v1165 = vld [vmem:[#allocation6 + $0x1d8] sm:$0xff]
    %v1166 = vld [vmem:[#allocation6 + $0x1e0] sm:$0xff]
    %v1167 = vld [vmem:[#allocation6 + $0x1e8] sm:$0xff]
    %v1168 = vld [vmem:[#allocation6 + $0x1f0] sm:$0xff]
    %v1169 = vld [vmem:[#allocation6 + $0x1f8] sm:$0xff]
    %1170 = vmatprep.subr.mxu0 %v1107
    %1171 = vmatpush1.msra.mxu0 %v1106
    %1172 = vmatprep.subr.mxu0 %v1109
    %1173 = vmatpush1.msra.mxu0 %v1108
    %1174 = vmatprep.subr.mxu0 %v1111
    %1175 = vmatpush1.msra.mxu0 %v1110
    %1176 = vmatprep.subr.mxu0 %v1113
    %1177 = vmatpush1.msra.mxu0 %v1112
    %1178 = vmatprep.subr.mxu0 %v1115
    %1179 = vmatpush1.msra.mxu0 %v1114
    %1180 = vmatprep.subr.mxu0 %v1117
    %1181 = vmatpush1.msra.mxu0 %v1116
    %1182 = vmatprep.subr.mxu0 %v1119
    %1183 = vmatpush1.msra.mxu0 %v1118
    %1184 = vmatprep.subr.mxu0 %v1121
    %1185 = vmatpush1.msra.mxu0 %v1120
    %1186 = vmatprep.subr.mxu0 %v1123
    %1187 = vmatpush1.msra.mxu0 %v1122
    %1188 = vmatprep.subr.mxu0 %v1125
    %1189 = vmatpush1.msra.mxu0 %v1124
    %1190 = vmatprep.subr.mxu0 %v1127
    %1191 = vmatpush1.msra.mxu0 %v1126
    %1192 = vmatprep.subr.mxu0 %v1129
    %1193 = vmatpush1.msra.mxu0 %v1128
    %1194 = vmatprep.subr.mxu0 %v1131
    %1195 = vmatpush1.msra.mxu0 %v1130
    %1196 = vmatprep.subr.mxu0 %v1133
    %1197 = vmatpush1.msra.mxu0 %v1132
    %1198 = vmatprep.subr.mxu0 %v1135
    %1199 = vmatpush1.msra.mxu0 %v1134
    %1200 = vmatprep.subr.mxu0 %v1137
    %1201 = vmatpush1.msra.mxu0 %v1136
    %1202 = vmatprep.subr.mxu0 %v1139
    %1203 = vmatpush1.msra.mxu0 %v1138
    %1204 = vmatprep.subr.mxu0 %v1141
    %1205 = vmatpush1.msra.mxu0 %v1140
    %1206 = vmatprep.subr.mxu0 %v1143
    %1207 = vmatpush1.msra.mxu0 %v1142
    %1208 = vmatprep.subr.mxu0 %v1145
    %1209 = vmatpush1.msra.mxu0 %v1144
    %1210 = vmatprep.subr.mxu0 %v1147
    %1211 = vmatpush1.msra.mxu0 %v1146
    %1212 = vmatprep.subr.mxu0 %v1149
    %1213 = vmatpush1.msra.mxu0 %v1148
    %1214 = vmatprep.subr.mxu0 %v1151
    %1215 = vmatpush1.msra.mxu0 %v1150
    %1216 = vmatprep.subr.mxu0 %v1153
    %1217 = vmatpush1.msra.mxu0 %v1152
    %1218 = vmatprep.subr.mxu0 %v1155
    %1219 = vmatpush1.msra.mxu0 %v1154
    %1220 = vmatprep.subr.mxu0 %v1157
    %1221 = vmatpush1.msra.mxu0 %v1156
    %1222 = vmatprep.subr.mxu0 %v1159
    %1223 = vmatpush1.msra.mxu0 %v1158
    %1224 = vmatprep.subr.mxu0 %v1161
    %1225 = vmatpush1.msra.mxu0 %v1160
    %1226 = vmatprep.subr.mxu0 %v1163
    %1227 = vmatpush1.msra.mxu0 %v1162
    %1228 = vmatprep.subr.mxu0 %v1165
    %1229 = vmatpush1.msra.mxu0 %v1164
    %1230 = vmatprep.subr.mxu0 %v1167
    %1231 = vmatpush1.msra.mxu0 %v1166
    %1232 = vmatprep.subr.mxu0 %v1169
    %1233 = vmatpush1.msra.mxu0 %v1168
    %1234 = vmatprep.mubr.f32.mxu0 %v1099
    %1235 = vmatmul.mubr.f32.gmra.mrb[0].mxu0 %v1098
    %v1236 = vpop.f32.mrb[0].mxu0
    %v1237 = vadd.f32 0.0, %v1236
    %v1238 = vpop.f32.mrb[0].mxu0
    %v1239 = vadd.f32 0.0, %v1238
    %1240 = vdwg.mxu0
    %v1241 = vadd.f32 %v1104, %v1237
    %v1242 = vadd.f32 %v1105, %v1239
    %v1243 = vmul.f32 %v1098, 0.9
    %v1244 = vmul.f32 %v1099, 0.9
    %v1245 = vtanh.pop %v1241
    %v1246 = vtanh.pop %v1242
    %v1247 = vmul.f32 %v1245, 0.1
    %v1248 = vmul.f32 %v1246, 0.1
    %v1249 = vadd.f32 %v1243, %v1247
    %v1250 = vadd.f32 %v1244, %v1248
    %s1251 = scalar_lea.vmem [#allocation8], 112
    %1252 = vst [vmem:[%s1251] sm:$0xff] %v1249
    %1253 = vst [vmem:[%s1251 + $0x8] sm:$0xff] %v1250
    %s1254 = scalar_lea.vmem [#allocation3], 128
    %v1255 = vld [vmem:[%s1254] sm:$0xff]
    %v1256 = vld [vmem:[%s1254 + $0x8] sm:$0xff]
    %v1257 = vld [vmem:[#allocation6] sm:$0xff]
    %v1258 = vld [vmem:[#allocation6 + $0x8] sm:$0xff]
    %v1259 = vld [vmem:[#allocation6 + $0x10] sm:$0xff]
    %v1260 = vld [vmem:[#allocation6 + $0x18] sm:$0xff]
    %v1261 = vld [vmem:[#allocation6 + $0x20] sm:$0xff]
    %v1262 = vld [vmem:[#allocation6 + $0x28] sm:$0xff]
    %v1263 = vld [vmem:[#allocation6 + $0x30] sm:$0xff]
    %v1264 = vld [vmem:[#allocation6 + $0x38] sm:$0xff]
    %v1265 = vld [vmem:[#allocation6 + $0x40] sm:$0xff]
    %v1266 = vld [vmem:[#allocation6 + $0x48] sm:$0xff]
    %v1267 = vld [vmem:[#allocation6 + $0x50] sm:$0xff]
    %v1268 = vld [vmem:[#allocation6 + $0x58] sm:$0xff]
    %v1269 = vld [vmem:[#allocation6 + $0x60] sm:$0xff]
    %v1270 = vld [vmem:[#allocation6 + $0x68] sm:$0xff]
    %v1271 = vld [vmem:[#allocation6 + $0x70] sm:$0xff]
    %v1272 = vld [vmem:[#allocation6 + $0x78] sm:$0xff]
    %v1273 = vld [vmem:[#allocation6 + $0x80] sm:$0xff]
    %v1274 = vld [vmem:[#allocation6 + $0x88] sm:$0xff]
    %v1275 = vld [vmem:[#allocation6 + $0x90] sm:$0xff]
    %v1276 = vld [vmem:[#allocation6 + $0x98] sm:$0xff]
    %v1277 = vld [vmem:[#allocation6 + $0xa0] sm:$0xff]
    %v1278 = vld [vmem:[#allocation6 + $0xa8] sm:$0xff]
    %v1279 = vld [vmem:[#allocation6 + $0xb0] sm:$0xff]
    %v1280 = vld [vmem:[#allocation6 + $0xb8] sm:$0xff]
    %v1281 = vld [vmem:[#allocation6 + $0xc0] sm:$0xff]
    %v1282 = vld [vmem:[#allocation6 + $0xc8] sm:$0xff]
    %v1283 = vld [vmem:[#allocation6 + $0xd0] sm:$0xff]
    %v1284 = vld [vmem:[#allocation6 + $0xd8] sm:$0xff]
    %v1285 = vld [vmem:[#allocation6 + $0xe0] sm:$0xff]
    %v1286 = vld [vmem:[#allocation6 + $0xe8] sm:$0xff]
    %v1287 = vld [vmem:[#allocation6 + $0xf0] sm:$0xff]
    %v1288 = vld [vmem:[#allocation6 + $0xf8] sm:$0xff]
    %v1289 = vld [vmem:[#allocation6 + $0x100] sm:$0xff]
    %v1290 = vld [vmem:[#allocation6 + $0x108] sm:$0xff]
    %v1291 = vld [vmem:[#allocation6 + $0x110] sm:$0xff]
    %v1292 = vld [vmem:[#allocation6 + $0x118] sm:$0xff]
    %v1293 = vld [vmem:[#allocation6 + $0x120] sm:$0xff]
    %v1294 = vld [vmem:[#allocation6 + $0x128] sm:$0xff]
    %v1295 = vld [vmem:[#allocation6 + $0x130] sm:$0xff]
    %v1296 = vld [vmem:[#allocation6 + $0x138] sm:$0xff]
    %v1297 = vld [vmem:[#allocation6 + $0x140] sm:$0xff]
    %v1298 = vld [vmem:[#allocation6 + $0x148] sm:$0xff]
    %v1299 = vld [vmem:[#allocation6 + $0x150] sm:$0xff]
    %v1300 = vld [vmem:[#allocation6 + $0x158] sm:$0xff]
    %v1301 = vld [vmem:[#allocation6 + $0x160] sm:$0xff]
    %v1302 = vld [vmem:[#allocation6 + $0x168] sm:$0xff]
    %v1303 = vld [vmem:[#allocation6 + $0x170] sm:$0xff]
    %v1304 = vld [vmem:[#allocation6 + $0x178] sm:$0xff]
    %v1305 = vld [vmem:[#allocation6 + $0x180] sm:$0xff]
    %v1306 = vld [vmem:[#allocation6 + $0x188] sm:$0xff]
    %v1307 = vld [vmem:[#allocation6 + $0x190] sm:$0xff]
    %v1308 = vld [vmem:[#allocation6 + $0x198] sm:$0xff]
    %v1309 = vld [vmem:[#allocation6 + $0x1a0] sm:$0xff]
    %v1310 = vld [vmem:[#allocation6 + $0x1a8] sm:$0xff]
    %v1311 = vld [vmem:[#allocation6 + $0x1b0] sm:$0xff]
    %v1312 = vld [vmem:[#allocation6 + $0x1b8] sm:$0xff]
    %v1313 = vld [vmem:[#allocation6 + $0x1c0] sm:$0xff]
    %v1314 = vld [vmem:[#allocation6 + $0x1c8] sm:$0xff]
    %v1315 = vld [vmem:[#allocation6 + $0x1d0] sm:$0xff]
    %v1316 = vld [vmem:[#allocation6 + $0x1d8] sm:$0xff]
    %v1317 = vld [vmem:[#allocation6 + $0x1e0] sm:$0xff]
    %v1318 = vld [vmem:[#allocation6 + $0x1e8] sm:$0xff]
    %v1319 = vld [vmem:[#allocation6 + $0x1f0] sm:$0xff]
    %v1320 = vld [vmem:[#allocation6 + $0x1f8] sm:$0xff]
    %1321 = vmatprep.subr.mxu0 %v1258
    %1322 = vmatpush1.msra.mxu0 %v1257
    %1323 = vmatprep.subr.mxu0 %v1260
    %1324 = vmatpush1.msra.mxu0 %v1259
    %1325 = vmatprep.subr.mxu0 %v1262
    %1326 = vmatpush1.msra.mxu0 %v1261
    %1327 = vmatprep.subr.mxu0 %v1264
    %1328 = vmatpush1.msra.mxu0 %v1263
    %1329 = vmatprep.subr.mxu0 %v1266
    %1330 = vmatpush1.msra.mxu0 %v1265
    %1331 = vmatprep.subr.mxu0 %v1268
    %1332 = vmatpush1.msra.mxu0 %v1267
    %1333 = vmatprep.subr.mxu0 %v1270
    %1334 = vmatpush1.msra.mxu0 %v1269
    %1335 = vmatprep.subr.mxu0 %v1272
    %1336 = vmatpush1.msra.mxu0 %v1271
    %1337 = vmatprep.subr.mxu0 %v1274
    %1338 = vmatpush1.msra.mxu0 %v1273
    %1339 = vmatprep.subr.mxu0 %v1276
    %1340 = vmatpush1.msra.mxu0 %v1275
    %1341 = vmatprep.subr.mxu0 %v1278
    %1342 = vmatpush1.msra.mxu0 %v1277
    %1343 = vmatprep.subr.mxu0 %v1280
    %1344 = vmatpush1.msra.mxu0 %v1279
    %1345 = vmatprep.subr.mxu0 %v1282
    %1346 = vmatpush1.msra.mxu0 %v1281
    %1347 = vmatprep.subr.mxu0 %v1284
    %1348 = vmatpush1.msra.mxu0 %v1283
    %1349 = vmatprep.subr.mxu0 %v1286
    %1350 = vmatpush1.msra.mxu0 %v1285
    %1351 = vmatprep.subr.mxu0 %v1288
    %1352 = vmatpush1.msra.mxu0 %v1287
    %1353 = vmatprep.subr.mxu0 %v1290
    %1354 = vmatpush1.msra.mxu0 %v1289
    %1355 = vmatprep.subr.mxu0 %v1292
    %1356 = vmatpush1.msra.mxu0 %v1291
    %1357 = vmatprep.subr.mxu0 %v1294
    %1358 = vmatpush1.msra.mxu0 %v1293
    %1359 = vmatprep.subr.mxu0 %v1296
    %1360 = vmatpush1.msra.mxu0 %v1295
    %1361 = vmatprep.subr.mxu0 %v1298
    %1362 = vmatpush1.msra.mxu0 %v1297
    %1363 = vmatprep.subr.mxu0 %v1300
    %1364 = vmatpush1.msra.mxu0 %v1299
    %1365 = vmatprep.subr.mxu0 %v1302
    %1366 = vmatpush1.msra.mxu0 %v1301
    %1367 = vmatprep.subr.mxu0 %v1304
    %1368 = vmatpush1.msra.mxu0 %v1303
    %1369 = vmatprep.subr.mxu0 %v1306
    %1370 = vmatpush1.msra.mxu0 %v1305
    %1371 = vmatprep.subr.mxu0 %v1308
    %1372 = vmatpush1.msra.mxu0 %v1307
    %1373 = vmatprep.subr.mxu0 %v1310
    %1374 = vmatpush1.msra.mxu0 %v1309
    %1375 = vmatprep.subr.mxu0 %v1312
    %1376 = vmatpush1.msra.mxu0 %v1311
    %1377 = vmatprep.subr.mxu0 %v1314
    %1378 = vmatpush1.msra.mxu0 %v1313
    %1379 = vmatprep.subr.mxu0 %v1316
    %1380 = vmatpush1.msra.mxu0 %v1315
    %1381 = vmatprep.subr.mxu0 %v1318
    %1382 = vmatpush1.msra.mxu0 %v1317
    %1383 = vmatprep.subr.mxu0 %v1320
    %1384 = vmatpush1.msra.mxu0 %v1319
    %1385 = vmatprep.mubr.f32.mxu0 %v1250
    %1386 = vmatmul.mubr.f32.gmra.mrb[0].mxu0 %v1249
    %v1387 = vpop.f32.mrb[0].mxu0
    %v1388 = vadd.f32 0.0, %v1387
    %v1389 = vpop.f32.mrb[0].mxu0
    %v1390 = vadd.f32 0.0, %v1389
    %1391 = vdwg.mxu0
    %v1392 = vadd.f32 %v1255, %v1388
    %v1393 = vadd.f32 %v1256, %v1390
    %v1394 = vmul.f32 %v1249, 0.9
    %v1395 = vmul.f32 %v1250, 0.9
    %v1396 = vtanh.pop %v1392
    %v1397 = vtanh.pop %v1393
    %v1398 = vmul.f32 %v1396, 0.1
    %v1399 = vmul.f32 %v1397, 0.1
    %v1400 = vadd.f32 %v1394, %v1398
    %v1401 = vadd.f32 %v1395, %v1399
    %s1402 = scalar_lea.vmem [#allocation8], 128
    %1403 = vst [vmem:[%s1402] sm:$0xff] %v1400
    %1404 = vst [vmem:[%s1402 + $0x8] sm:$0xff] %v1401
    %s1405 = scalar_lea.vmem [#allocation3], 144
    %v1406 = vld [vmem:[%s1405] sm:$0xff]
    %v1407 = vld [vmem:[%s1405 + $0x8] sm:$0xff]
    %v1408 = vld [vmem:[#allocation6] sm:$0xff]
    %v1409 = vld [vmem:[#allocation6 + $0x8] sm:$0xff]
    %v1410 = vld [vmem:[#allocation6 + $0x10] sm:$0xff]
    %v1411 = vld [vmem:[#allocation6 + $0x18] sm:$0xff]
    %v1412 = vld [vmem:[#allocation6 + $0x20] sm:$0xff]
    %v1413 = vld [vmem:[#allocation6 + $0x28] sm:$0xff]
    %v1414 = vld [vmem:[#allocation6 + $0x30] sm:$0xff]
    %v1415 = vld [vmem:[#allocation6 + $0x38] sm:$0xff]
    %v1416 = vld [vmem:[#allocation6 + $0x40] sm:$0xff]
    %v1417 = vld [vmem:[#allocation6 + $0x48] sm:$0xff]
    %v1418 = vld [vmem:[#allocation6 + $0x50] sm:$0xff]
    %v1419 = vld [vmem:[#allocation6 + $0x58] sm:$0xff]
    %v1420 = vld [vmem:[#allocation6 + $0x60] sm:$0xff]
    %v1421 = vld [vmem:[#allocation6 + $0x68] sm:$0xff]
    %v1422 = vld [vmem:[#allocation6 + $0x70] sm:$0xff]
    %v1423 = vld [vmem:[#allocation6 + $0x78] sm:$0xff]
    %v1424 = vld [vmem:[#allocation6 + $0x80] sm:$0xff]
    %v1425 = vld [vmem:[#allocation6 + $0x88] sm:$0xff]
    %v1426 = vld [vmem:[#allocation6 + $0x90] sm:$0xff]
    %v1427 = vld [vmem:[#allocation6 + $0x98] sm:$0xff]
    %v1428 = vld [vmem:[#allocation6 + $0xa0] sm:$0xff]
    %v1429 = vld [vmem:[#allocation6 + $0xa8] sm:$0xff]
    %v1430 = vld [vmem:[#allocation6 + $0xb0] sm:$0xff]
    %v1431 = vld [vmem:[#allocation6 + $0xb8] sm:$0xff]
    %v1432 = vld [vmem:[#allocation6 + $0xc0] sm:$0xff]
    %v1433 = vld [vmem:[#allocation6 + $0xc8] sm:$0xff]
    %v1434 = vld [vmem:[#allocation6 + $0xd0] sm:$0xff]
    %v1435 = vld [vmem:[#allocation6 + $0xd8] sm:$0xff]
    %v1436 = vld [vmem:[#allocation6 + $0xe0] sm:$0xff]
    %v1437 = vld [vmem:[#allocation6 + $0xe8] sm:$0xff]
    %v1438 = vld [vmem:[#allocation6 + $0xf0] sm:$0xff]
    %v1439 = vld [vmem:[#allocation6 + $0xf8] sm:$0xff]
    %v1440 = vld [vmem:[#allocation6 + $0x100] sm:$0xff]
    %v1441 = vld [vmem:[#allocation6 + $0x108] sm:$0xff]
    %v1442 = vld [vmem:[#allocation6 + $0x110] sm:$0xff]
    %v1443 = vld [vmem:[#allocation6 + $0x118] sm:$0xff]
    %v1444 = vld [vmem:[#allocation6 + $0x120] sm:$0xff]
    %v1445 = vld [vmem:[#allocation6 + $0x128] sm:$0xff]
    %v1446 = vld [vmem:[#allocation6 + $0x130] sm:$0xff]
    %v1447 = vld [vmem:[#allocation6 + $0x138] sm:$0xff]
    %v1448 = vld [vmem:[#allocation6 + $0x140] sm:$0xff]
    %v1449 = vld [vmem:[#allocation6 + $0x148] sm:$0xff]
    %v1450 = vld [vmem:[#allocation6 + $0x150] sm:$0xff]
    %v1451 = vld [vmem:[#allocation6 + $0x158] sm:$0xff]
    %v1452 = vld [vmem:[#allocation6 + $0x160] sm:$0xff]
    %v1453 = vld [vmem:[#allocation6 + $0x168] sm:$0xff]
    %v1454 = vld [vmem:[#allocation6 + $0x170] sm:$0xff]
    %v1455 = vld [vmem:[#allocation6 + $0x178] sm:$0xff]
    %v1456 = vld [vmem:[#allocation6 + $0x180] sm:$0xff]
    %v1457 = vld [vmem:[#allocation6 + $0x188] sm:$0xff]
    %v1458 = vld [vmem:[#allocation6 + $0x190] sm:$0xff]
    %v1459 = vld [vmem:[#allocation6 + $0x198] sm:$0xff]
    %v1460 = vld [vmem:[#allocation6 + $0x1a0] sm:$0xff]
    %v1461 = vld [vmem:[#allocation6 + $0x1a8] sm:$0xff]
    %v1462 = vld [vmem:[#allocation6 + $0x1b0] sm:$0xff]
    %v1463 = vld [vmem:[#allocation6 + $0x1b8] sm:$0xff]
    %v1464 = vld [vmem:[#allocation6 + $0x1c0] sm:$0xff]
    %v1465 = vld [vmem:[#allocation6 + $0x1c8] sm:$0xff]
    %v1466 = vld [vmem:[#allocation6 + $0x1d0] sm:$0xff]
    %v1467 = vld [vmem:[#allocation6 + $0x1d8] sm:$0xff]
    %v1468 = vld [vmem:[#allocation6 + $0x1e0] sm:$0xff]
    %v1469 = vld [vmem:[#allocation6 + $0x1e8] sm:$0xff]
    %v1470 = vld [vmem:[#allocation6 + $0x1f0] sm:$0xff]
    %v1471 = vld [vmem:[#allocation6 + $0x1f8] sm:$0xff]
    %1472 = vmatprep.subr.mxu0 %v1409
    %1473 = vmatpush1.msra.mxu0 %v1408
    %1474 = vmatprep.subr.mxu0 %v1411
    %1475 = vmatpush1.msra.mxu0 %v1410
    %1476 = vmatprep.subr.mxu0 %v1413
    %1477 = vmatpush1.msra.mxu0 %v1412
    %1478 = vmatprep.subr.mxu0 %v1415
    %1479 = vmatpush1.msra.mxu0 %v1414
    %1480 = vmatprep.subr.mxu0 %v1417
    %1481 = vmatpush1.msra.mxu0 %v1416
    %1482 = vmatprep.subr.mxu0 %v1419
    %1483 = vmatpush1.msra.mxu0 %v1418
    %1484 = vmatprep.subr.mxu0 %v1421
    %1485 = vmatpush1.msra.mxu0 %v1420
    %1486 = vmatprep.subr.mxu0 %v1423
    %1487 = vmatpush1.msra.mxu0 %v1422
    %1488 = vmatprep.subr.mxu0 %v1425
    %1489 = vmatpush1.msra.mxu0 %v1424
    %1490 = vmatprep.subr.mxu0 %v1427
    %1491 = vmatpush1.msra.mxu0 %v1426
    %1492 = vmatprep.subr.mxu0 %v1429
    %1493 = vmatpush1.msra.mxu0 %v1428
    %1494 = vmatprep.subr.mxu0 %v1431
    %1495 = vmatpush1.msra.mxu0 %v1430
    %1496 = vmatprep.subr.mxu0 %v1433
    %1497 = vmatpush1.msra.mxu0 %v1432
    %1498 = vmatprep.subr.mxu0 %v1435
    %1499 = vmatpush1.msra.mxu0 %v1434
    %1500 = vmatprep.subr.mxu0 %v1437
    %1501 = vmatpush1.msra.mxu0 %v1436
    %1502 = vmatprep.subr.mxu0 %v1439
    %1503 = vmatpush1.msra.mxu0 %v1438
    %1504 = vmatprep.subr.mxu0 %v1441
    %1505 = vmatpush1.msra.mxu0 %v1440
    %1506 = vmatprep.subr.mxu0 %v1443
    %1507 = vmatpush1.msra.mxu0 %v1442
    %1508 = vmatprep.subr.mxu0 %v1445
    %1509 = vmatpush1.msra.mxu0 %v1444
    %1510 = vmatprep.subr.mxu0 %v1447
    %1511 = vmatpush1.msra.mxu0 %v1446
    %1512 = vmatprep.subr.mxu0 %v1449
    %1513 = vmatpush1.msra.mxu0 %v1448
    %1514 = vmatprep.subr.mxu0 %v1451
    %1515 = vmatpush1.msra.mxu0 %v1450
    %1516 = vmatprep.subr.mxu0 %v1453
    %1517 = vmatpush1.msra.mxu0 %v1452
    %1518 = vmatprep.subr.mxu0 %v1455
    %1519 = vmatpush1.msra.mxu0 %v1454
    %1520 = vmatprep.subr.mxu0 %v1457
    %1521 = vmatpush1.msra.mxu0 %v1456
    %1522 = vmatprep.subr.mxu0 %v1459
    %1523 = vmatpush1.msra.mxu0 %v1458
    %1524 = vmatprep.subr.mxu0 %v1461
    %1525 = vmatpush1.msra.mxu0 %v1460
    %1526 = vmatprep.subr.mxu0 %v1463
    %1527 = vmatpush1.msra.mxu0 %v1462
    %1528 = vmatprep.subr.mxu0 %v1465
    %1529 = vmatpush1.msra.mxu0 %v1464
    %1530 = vmatprep.subr.mxu0 %v1467
    %1531 = vmatpush1.msra.mxu0 %v1466
    %1532 = vmatprep.subr.mxu0 %v1469
    %1533 = vmatpush1.msra.mxu0 %v1468
    %1534 = vmatprep.subr.mxu0 %v1471
    %1535 = vmatpush1.msra.mxu0 %v1470
    %1536 = vmatprep.mubr.f32.mxu0 %v1401
    %1537 = vmatmul.mubr.f32.gmra.mrb[0].mxu0 %v1400
    %v1538 = vpop.f32.mrb[0].mxu0
    %v1539 = vadd.f32 0.0, %v1538
    %v1540 = vpop.f32.mrb[0].mxu0
    %v1541 = vadd.f32 0.0, %v1540
    %1542 = vdwg.mxu0
    %v1543 = vadd.f32 %v1406, %v1539
    %v1544 = vadd.f32 %v1407, %v1541
    %v1545 = vmul.f32 %v1400, 0.9
    %v1546 = vmul.f32 %v1401, 0.9
    %v1547 = vtanh.pop %v1543
    %v1548 = vtanh.pop %v1544
    %v1549 = vmul.f32 %v1547, 0.1
    %v1550 = vmul.f32 %v1548, 0.1
    %v1551 = vadd.f32 %v1545, %v1549
    %v1552 = vadd.f32 %v1546, %v1550
    %s1553 = scalar_lea.vmem [#allocation8], 144
    %1554 = vst [vmem:[%s1553] sm:$0xff] %v1551
    %1555 = vst [vmem:[%s1553 + $0x8] sm:$0xff] %v1552
    %1556 = vst [vmem:[#allocation2] sm:$0xff] %v1551
    %1557 = vst [vmem:[#allocation2 + $0x8] sm:$0xff] %v1552
    // Predicated region
    $region22: #{tpu_custom_call.1} parent=1 // pred_check
      _
    $region23: #{tpu_custom_call.1} parent=1 // pred_check_branch
      %1559 = sbr.rel (0) target = $region25
    $region24: #{tpu_custom_call.1} parent=1 // pred_region
      %s1561 = ssub.s32 2560, 2560
      %1562 = vsyncadd [#allocation5], %s1561
      %s1563 = sshll.u32 [#allocation8], 4
      %s1564 = int_to_ptr.vmem [resolvable:$true] %s1563
      %1569 = dma.vmem_to_hbm [thread:$0]  %s1564, 2560, %s2, [#allocation5], 256, 256, 16
    $region25: #{tpu_custom_call.1} parent=1 // pred_fallthru
      _
    // Predicated region
    $region26: #{tpu_custom_call.1} parent=1 // pred_check
      _
    $region27: #{tpu_custom_call.1} parent=1 // pred_check_branch
      %1571 = sbr.rel (0) target = $region29
    $region28: #{tpu_custom_call.1} parent=1 // pred_region
      %1572 = dma.done [#allocation5], 2560
    $region29: #{tpu_custom_call.1} parent=1 // pred_fallthru
      _
    %1573 = vsyncpa [#allocation4], 1
    %1574 = vsyncpa [#allocation7], 1
    %1575 = vsyncpa [#allocation5], 1

</llo_original>
